<compile_context>
chip_gen: v6e
topology: v6e:2x2x1
jax: 0.10.0
libtpu: 0.0.40
codegen_flags: <defaults>
</compile_context>

<pallas_src>
import functools

import jax
import jax.numpy as jnp
from jax import lax
from jax.experimental import pallas as pl
from jax.experimental.pallas import tpu as pltpu


# -----------------------------------------------------------------------------
# Pallas kernel: stacked LSTM over time + final linear + sigmoid
# -----------------------------------------------------------------------------
def lstm_classifier_kernel(
    emb_ref,     # [T, B, H] f32  time-major embeddings (emsize == nhidden assumed)
    len_ref,     # [B, 1]  i32  sequence lengths
    w_ih_ref,    # [L, H, 4H] f32  (transposed PyTorch weight_ih_l{l})
    w_hh_ref,    # [L, H, 4H] f32  (transposed PyTorch weight_hh_l{l})
    b_ref,       # [L, 1, 4H] f32  (bias_ih + bias_hh)
    w_out_ref,   # [H, noutput] f32
    b_out_ref,   # [1, noutput] f32
    out_ref,     # [B, noutput] f32
    x_buf,       # scratch [T, B, H] f32 : masked outputs of layer l-1 (next layer's input)
    *,
    nlayers,
    seqlen,
):
    T, B, H = emb_ref.shape

    # pack_padded_sequence freeze-mask, hoisted out of all loops: [T, B, 1] bool.
    time_ids = lax.broadcasted_iota(jnp.int32, (T, B, 1), 0)
    masks = time_ids < len_ref[...][None, :, :]          # [T, B, 1] bool

    h_last = None
    for l in range(nlayers):
        # ---- off the serial path: input projection for ALL timesteps at once ----
        src = emb_ref if l == 0 else x_buf               # [T, B, H]
        x_all = src[...].reshape(T * B, H)
        gin = (
            jnp.dot(x_all, w_ih_ref[l], preferred_element_type=jnp.float32)
            + b_ref[l]                                    # bias folded in once
        ).reshape(T, B, 4 * H)                            # [T, B, 4H]

        # ---- serial recurrence: one small matmul + elementwise per step ----
        h = jnp.zeros((B, H), jnp.float32)                # state stays in vregs
        c = jnp.zeros((B, H), jnp.float32)
        # TODO(synk): for large T switch this static unroll to lax.fori_loop with
        # gin / x_buf indexed via pl.ds (bounds live ranges / compile time).
        for t in range(seqlen):
            gates = gin[t] + jnp.dot(
                h, w_hh_ref[l], preferred_element_type=jnp.float32
            )                                             # [B, 4H] == one f32 vreg
            sig = jax.nn.sigmoid(gates)                   # one EUP pass, full vreg
            tnh = jnp.tanh(gates)                         # one EUP pass, full vreg
            i_g = sig[:, 0 * H:1 * H]
            f_g = sig[:, 1 * H:2 * H]
            o_g = sig[:, 3 * H:4 * H]
            g_g = tnh[:, 2 * H:3 * H]

            c_new = f_g * c + i_g * g_g
            h_new = o_g * jnp.tanh(c_new)

            m = masks[t]                                  # [B, 1] bool
            h = jnp.where(m, h_new, h)                    # single vselect per state
            c = jnp.where(m, c_new, c)

            if l < nlayers - 1:
                x_buf[t] = h                              # input to next layer

        h_last = h                                        # final hidden of layer l

    # hidden = state.h[-1]  (last layer final hidden), then Linear + sigmoid.
    logits = (
        jnp.dot(h_last, w_out_ref[...], preferred_element_type=jnp.float32)
        + b_out_ref[...]
    )
    out_ref[...] = jax.nn.sigmoid(logits)


# -----------------------------------------------------------------------------
# Wrapper
# -----------------------------------------------------------------------------
def lstm_classifier_forward(indices, lengths, params, *, nlayers):
    """indices: [B, T] int32; lengths: [B] int32. Returns sigmoid logits [B, noutput]."""
    emb_table, w_ih, w_hh, b, w_out, b_out = params
    B, T = indices.shape
    H = w_hh.shape[1]
    noutput = w_out.shape[1]
    assert emb_table.shape[1] == H, "kernel assumes emsize == nhidden"

    # Glue: embedding lookup (gather) in plain JAX, then time-major layout so the
    # kernel slices contiguous [B, H] tiles per step.
    # TODO(synk): at production B*T, fuse the gather via PrefetchScalarGridSpec +
    # pl.Element row-gather and tile T with a grid axis (v7x 64 MiB VMEM).
    embeddings = emb_table[indices].astype(jnp.float32)          # [B, T, E]
    embeddings = jnp.transpose(embeddings, (1, 0, 2))            # [T, B, E]
    lengths_i = lengths.astype(jnp.int32).reshape(B, 1)

    kernel = functools.partial(lstm_classifier_kernel, nlayers=nlayers, seqlen=T)

    vmem = pl.BlockSpec(memory_space=pltpu.MemorySpace.VMEM)
    return pl.pallas_call(
        kernel,
        out_shape=jax.ShapeDtypeStruct((B, noutput), jnp.float32),
        in_specs=[vmem] * 7,
        out_specs=vmem,
        scratch_shapes=[
            pltpu.VMEM((T, B, H), jnp.float32),   # inter-layer activation sequence
        ],
    )(embeddings, lengths_i, w_ih, w_hh, b, w_out, b_out)


# -----------------------------------------------------------------------------
# Deterministic parameter init (matches LSTMClassifier.init_weights shapes)
# -----------------------------------------------------------------------------
def init_params(key, *, ntokens, emsize, nhidden, nlayers, noutput):
    initrange = 0.1
    ks = jax.random.split(key, 2 + 4 * nlayers + 1)
    k_iter = iter(ks)

    def u(k, shape):
        return jax.random.uniform(k, shape, jnp.float32, -initrange, initrange)

    emb_table = u(next(k_iter), (ntokens, emsize))

    w_ih_layers, w_hh_layers, b_layers = [], [], []
    for l in range(nlayers):
        in_dim = emsize if l == 0 else nhidden
        w_ih_l = u(next(k_iter), (4 * nhidden, in_dim))   # PyTorch weight_ih_l{l}
        w_hh_l = u(next(k_iter), (4 * nhidden, nhidden))  # PyTorch weight_hh_l{l}
        b_ih_l = u(next(k_iter), (4 * nhidden,))
        b_hh_l = u(next(k_iter), (4 * nhidden,))
        w_ih_layers.append(w_ih_l.T)                       # [in, 4H]
        w_hh_layers.append(w_hh_l.T)                       # [H, 4H]
        b_layers.append((b_ih_l + b_hh_l).reshape(1, 4 * nhidden))

    w_ih = jnp.stack(w_ih_layers)   # [L, H, 4H]  (emsize == nhidden)
    w_hh = jnp.stack(w_hh_layers)   # [L, H, 4H]
    b = jnp.stack(b_layers)         # [L, 1, 4H]

    w_out = u(next(k_iter), (noutput, nhidden)).T          # [H, noutput]
    b_out = jnp.zeros((1, noutput), jnp.float32)           # linear.bias.fill_(0)

    return emb_table, w_ih, w_hh, b, w_out, b_out


# -----------------------------------------------------------------------------
# Pure-JAX reference (same math, no Pallas) for a sanity check
# -----------------------------------------------------------------------------
def reference_forward(indices, lengths, params, *, nlayers):
    emb_table, w_ih, w_hh, b, w_out, b_out = params
    B, T = indices.shape
    H = w_hh.shape[1]
    emb = emb_table[indices].astype(jnp.float32)
    h = jnp.zeros((nlayers, B, H), jnp.float32)
    c = jnp.zeros((nlayers, B, H), jnp.float32)
    for t in range(T):
        mask = (t < lengths).astype(jnp.float32)[:, None]
        x = emb[:, t, :]
        new_h, new_c = [], []
        for l in range(nlayers):
            gates = x @ w_ih[l] + h[l] @ w_hh[l] + b[l]
            i_g = jax.nn.sigmoid(gates[:, 0 * H : 1 * H])
            f_g = jax.nn.sigmoid(gates[:, 1 * H : 2 * H])
            g_g = jnp.tanh(gates[:, 2 * H : 3 * H])
            o_g = jax.nn.sigmoid(gates[:, 3 * H : 4 * H])
            c_n = f_g * c[l] + i_g * g_g
            h_n = o_g * jnp.tanh(c_n)
            h_l = mask * h_n + (1.0 - mask) * h[l]
            c_l = mask * c_n + (1.0 - mask) * c[l]
            new_h.append(h_l)
            new_c.append(c_l)
            x = h_l
        h = jnp.stack(new_h)
        c = jnp.stack(new_c)
    return jax.nn.sigmoid(h[-1] @ w_out + b_out)


if __name__ == "__main__":
    # Small shapes consistent with the module.
    B, T = 8, 8
    ntokens, emsize, nhidden, nlayers, noutput = 50, 32, 32, 2, 1

    key = jax.random.PRNGKey(0)
    k_params, k_idx = jax.random.split(key)

    params = init_params(
        k_params,
        ntokens=ntokens,
        emsize=emsize,
        nhidden=nhidden,
        nlayers=nlayers,
        noutput=noutput,
    )

    indices = jax.random.randint(k_idx, (B, T), 0, ntokens, dtype=jnp.int32)
    # pack_padded_sequence expects descending lengths.
    lengths = jnp.array([8, 8, 7, 6, 5, 4, 3, 2], dtype=jnp.int32)

    out = lstm_classifier_forward(indices, lengths, params, nlayers=nlayers)
    out = jax.block_until_ready(out)

    ref = reference_forward(indices, lengths, params, nlayers=nlayers)
    assert out.shape == (B, noutput)
    assert jnp.allclose(out, ref, atol=1e-5, rtol=1e-5), (out, ref)

    print("KERNEL_OK")
</pallas_src>

<mosaic_0001>
module attributes {stable_mosaic.version = 11 : i64} {
  func.func @lstm_classifier_kernel(%arg0: memref<8x8x32xf32, #tpu.memory_space<vmem>>, %arg1: memref<8x1xi32, #tpu.memory_space<vmem>>, %arg2: memref<2x32x128xf32, #tpu.memory_space<vmem>>, %arg3: memref<2x32x128xf32, #tpu.memory_space<vmem>>, %arg4: memref<2x1x128xf32, #tpu.memory_space<vmem>>, %arg5: memref<32x1xf32, #tpu.memory_space<vmem>>, %arg6: memref<1x1xf32, #tpu.memory_space<vmem>>, %arg7: memref<8x1xf32, #tpu.memory_space<vmem>>, %arg8: memref<8x8x32xf32, #tpu.memory_space<vmem>>) attributes {dimension_semantics = [], scalar_prefetch = 0 : i64, scratch_operands = 1 : i64, tpu.core_type = #tpu.core_type<tc>} {
    %0 = tpu.iota {dimensions = array<i32: 0>} : vector<8x8x1xi32>
    %c0 = arith.constant 0 : index
    %c0_0 = arith.constant 0 : index
    %1 = vector.load %arg1[%c0, %c0_0] : memref<8x1xi32, #tpu.memory_space<vmem>>, vector<8x1xi32>
    %2 = vector.shape_cast %1 : vector<8x1xi32> to vector<1x8x1xi32>
    %3 = vector.broadcast %2 : vector<1x8x1xi32> to vector<8x8x1xi32>
    %4 = arith.cmpi slt, %0, %3 : vector<8x8x1xi32>
    %c0_1 = arith.constant 0 : index
    %c0_2 = arith.constant 0 : index
    %c0_3 = arith.constant 0 : index
    %5 = vector.load %arg0[%c0_1, %c0_2, %c0_3] : memref<8x8x32xf32, #tpu.memory_space<vmem>>, vector<8x8x32xf32>
    %6 = vector.shape_cast %5 : vector<8x8x32xf32> to vector<64x32xf32>
    %c0_4 = arith.constant 0 : index
    %c0_5 = arith.constant 0 : index
    %c0_6 = arith.constant 0 : index
    %7 = vector.load %arg2[%c0_4, %c0_5, %c0_6] : memref<2x32x128xf32, #tpu.memory_space<vmem>>, vector<1x32x128xf32>
    %8 = vector.shape_cast %7 : vector<1x32x128xf32> to vector<32x128xf32>
    %cst = arith.constant dense<0.000000e+00> : vector<64x128xf32>
    %9 = tpu.matmul %6, %8, %cst {dimension_numbers = #tpu.dot_dimension_numbers<[1], [0], [0], [1], [0, 0, 1, 1], [], []>} : vector<64x32xf32>, vector<32x128xf32>, vector<64x128xf32> -> vector<64x128xf32>
    %c0_7 = arith.constant 0 : index
    %c0_8 = arith.constant 0 : index
    %c0_9 = arith.constant 0 : index
    %10 = vector.load %arg4[%c0_7, %c0_8, %c0_9] : memref<2x1x128xf32, #tpu.memory_space<vmem>>, vector<1x1x128xf32>
    %11 = vector.shape_cast %10 : vector<1x1x128xf32> to vector<1x128xf32>
    %12 = vector.broadcast %11 : vector<1x128xf32> to vector<64x128xf32>
    %13 = arith.addf %9, %12 : vector<64x128xf32>
    %14 = vector.shape_cast %13 : vector<64x128xf32> to vector<8x8x128xf32>
    %cst_10 = arith.constant 0.000000e+00 : f32
    %15 = vector.broadcast %cst_10 : f32 to vector<8x32xf32>
    %cst_11 = arith.constant 0.000000e+00 : f32
    %16 = vector.broadcast %cst_11 : f32 to vector<8x32xf32>
    %17 = vector.extract_strided_slice %14 {offsets = [0, 0, 0], sizes = [1, 8, 128], strides = [1, 1, 1]} : vector<8x8x128xf32> to vector<1x8x128xf32>
    %18 = vector.shape_cast %17 : vector<1x8x128xf32> to vector<8x128xf32>
    %c0_12 = arith.constant 0 : index
    %c0_13 = arith.constant 0 : index
    %c0_14 = arith.constant 0 : index
    %19 = vector.load %arg3[%c0_12, %c0_13, %c0_14] : memref<2x32x128xf32, #tpu.memory_space<vmem>>, vector<1x32x128xf32>
    %20 = vector.shape_cast %19 : vector<1x32x128xf32> to vector<32x128xf32>
    %cst_15 = arith.constant dense<0.000000e+00> : vector<8x128xf32>
    %21 = tpu.matmul %15, %20, %cst_15 {dimension_numbers = #tpu.dot_dimension_numbers<[1], [0], [0], [1], [0, 0, 1, 1], [], []>} : vector<8x32xf32>, vector<32x128xf32>, vector<8x128xf32> -> vector<8x128xf32>
    %22 = arith.addf %18, %21 : vector<8x128xf32>
    %23 = arith.negf %22 : vector<8x128xf32>
    %24 = math.exp %23 : vector<8x128xf32>
    %cst_16 = arith.constant 1.000000e+00 : f32
    %25 = vector.broadcast %cst_16 : f32 to vector<8x128xf32>
    %26 = arith.addf %25, %24 : vector<8x128xf32>
    %27 = arith.divf %25, %26 : vector<8x128xf32>
    %28 = math.tanh %22 : vector<8x128xf32>
    %29 = vector.extract_strided_slice %27 {offsets = [0, 0], sizes = [8, 32], strides = [1, 1]} : vector<8x128xf32> to vector<8x32xf32>
    %30 = vector.extract_strided_slice %27 {offsets = [0, 32], sizes = [8, 32], strides = [1, 1]} : vector<8x128xf32> to vector<8x32xf32>
    %31 = vector.extract_strided_slice %27 {offsets = [0, 96], sizes = [8, 32], strides = [1, 1]} : vector<8x128xf32> to vector<8x32xf32>
    %32 = vector.extract_strided_slice %28 {offsets = [0, 64], sizes = [8, 32], strides = [1, 1]} : vector<8x128xf32> to vector<8x32xf32>
    %33 = arith.mulf %30, %16 : vector<8x32xf32>
    %34 = arith.mulf %29, %32 : vector<8x32xf32>
    %35 = arith.addf %33, %34 : vector<8x32xf32>
    %36 = math.tanh %35 : vector<8x32xf32>
    %37 = arith.mulf %31, %36 : vector<8x32xf32>
    %38 = vector.extract_strided_slice %4 {offsets = [0, 0, 0], sizes = [1, 8, 1], strides = [1, 1, 1]} : vector<8x8x1xi1> to vector<1x8x1xi1>
    %39 = vector.shape_cast %38 : vector<1x8x1xi1> to vector<8x1xi1>
    %40 = vector.shape_cast %39 : vector<8x1xi1> to vector<8x1xi1>
    %41 = vector.broadcast %40 : vector<8x1xi1> to vector<8x32xi1>
    %42 = arith.select %41, %37, %15 : vector<8x32xi1>, vector<8x32xf32>
    %43 = vector.shape_cast %39 : vector<8x1xi1> to vector<8x1xi1>
    %44 = vector.broadcast %43 : vector<8x1xi1> to vector<8x32xi1>
    %45 = arith.select %44, %35, %16 : vector<8x32xi1>, vector<8x32xf32>
    %c0_17 = arith.constant 0 : index
    %c0_18 = arith.constant 0 : index
    %c0_19 = arith.constant 0 : index
    %46 = vector.load %arg8[%c0_17, %c0_18, %c0_19] : memref<8x8x32xf32, #tpu.memory_space<vmem>>, vector<1x8x32xf32>
    %47 = vector.shape_cast %46 : vector<1x8x32xf32> to vector<8x32xf32>
    %48 = vector.shape_cast %42 : vector<8x32xf32> to vector<1x8x32xf32>
    tpu.vector_store %arg8[%c0_17, %c0_18, %c0_19], %48 {strides = array<i32>} : memref<8x8x32xf32, #tpu.memory_space<vmem>>, vector<1x8x32xf32>,
    %49 = vector.extract_strided_slice %14 {offsets = [1, 0, 0], sizes = [1, 8, 128], strides = [1, 1, 1]} : vector<8x8x128xf32> to vector<1x8x128xf32>
    %50 = vector.shape_cast %49 : vector<1x8x128xf32> to vector<8x128xf32>
    %c0_20 = arith.constant 0 : index
    %c0_21 = arith.constant 0 : index
    %c0_22 = arith.constant 0 : index
    %51 = vector.load %arg3[%c0_20, %c0_21, %c0_22] : memref<2x32x128xf32, #tpu.memory_space<vmem>>, vector<1x32x128xf32>
    %52 = vector.shape_cast %51 : vector<1x32x128xf32> to vector<32x128xf32>
    %cst_23 = arith.constant dense<0.000000e+00> : vector<8x128xf32>
    %53 = tpu.matmul %42, %52, %cst_23 {dimension_numbers = #tpu.dot_dimension_numbers<[1], [0], [0], [1], [0, 0, 1, 1], [], []>} : vector<8x32xf32>, vector<32x128xf32>, vector<8x128xf32> -> vector<8x128xf32>
    %54 = arith.addf %50, %53 : vector<8x128xf32>
    %55 = arith.negf %54 : vector<8x128xf32>
    %56 = math.exp %55 : vector<8x128xf32>
    %cst_24 = arith.constant 1.000000e+00 : f32
    %57 = vector.broadcast %cst_24 : f32 to vector<8x128xf32>
    %58 = arith.addf %57, %56 : vector<8x128xf32>
    %59 = arith.divf %57, %58 : vector<8x128xf32>
    %60 = math.tanh %54 : vector<8x128xf32>
    %61 = vector.extract_strided_slice %59 {offsets = [0, 0], sizes = [8, 32], strides = [1, 1]} : vector<8x128xf32> to vector<8x32xf32>
    %62 = vector.extract_strided_slice %59 {offsets = [0, 32], sizes = [8, 32], strides = [1, 1]} : vector<8x128xf32> to vector<8x32xf32>
    %63 = vector.extract_strided_slice %59 {offsets = [0, 96], sizes = [8, 32], strides = [1, 1]} : vector<8x128xf32> to vector<8x32xf32>
    %64 = vector.extract_strided_slice %60 {offsets = [0, 64], sizes = [8, 32], strides = [1, 1]} : vector<8x128xf32> to vector<8x32xf32>
    %65 = arith.mulf %62, %45 : vector<8x32xf32>
    %66 = arith.mulf %61, %64 : vector<8x32xf32>
    %67 = arith.addf %65, %66 : vector<8x32xf32>
    %68 = math.tanh %67 : vector<8x32xf32>
    %69 = arith.mulf %63, %68 : vector<8x32xf32>
    %70 = vector.extract_strided_slice %4 {offsets = [1, 0, 0], sizes = [1, 8, 1], strides = [1, 1, 1]} : vector<8x8x1xi1> to vector<1x8x1xi1>
    %71 = vector.shape_cast %70 : vector<1x8x1xi1> to vector<8x1xi1>
    %72 = vector.shape_cast %71 : vector<8x1xi1> to vector<8x1xi1>
    %73 = vector.broadcast %72 : vector<8x1xi1> to vector<8x32xi1>
    %74 = arith.select %73, %69, %42 : vector<8x32xi1>, vector<8x32xf32>
    %75 = vector.shape_cast %71 : vector<8x1xi1> to vector<8x1xi1>
    %76 = vector.broadcast %75 : vector<8x1xi1> to vector<8x32xi1>
    %77 = arith.select %76, %67, %45 : vector<8x32xi1>, vector<8x32xf32>
    %c1 = arith.constant 1 : index
    %c0_25 = arith.constant 0 : index
    %c0_26 = arith.constant 0 : index
    %78 = vector.load %arg8[%c1, %c0_25, %c0_26] : memref<8x8x32xf32, #tpu.memory_space<vmem>>, vector<1x8x32xf32>
    %79 = vector.shape_cast %78 : vector<1x8x32xf32> to vector<8x32xf32>
    %80 = vector.shape_cast %74 : vector<8x32xf32> to vector<1x8x32xf32>
    tpu.vector_store %arg8[%c1, %c0_25, %c0_26], %80 {strides = array<i32>} : memref<8x8x32xf32, #tpu.memory_space<vmem>>, vector<1x8x32xf32>,
    %81 = vector.extract_strided_slice %14 {offsets = [2, 0, 0], sizes = [1, 8, 128], strides = [1, 1, 1]} : vector<8x8x128xf32> to vector<1x8x128xf32>
    %82 = vector.shape_cast %81 : vector<1x8x128xf32> to vector<8x128xf32>
    %c0_27 = arith.constant 0 : index
    %c0_28 = arith.constant 0 : index
    %c0_29 = arith.constant 0 : index
    %83 = vector.load %arg3[%c0_27, %c0_28, %c0_29] : memref<2x32x128xf32, #tpu.memory_space<vmem>>, vector<1x32x128xf32>
    %84 = vector.shape_cast %83 : vector<1x32x128xf32> to vector<32x128xf32>
    %cst_30 = arith.constant dense<0.000000e+00> : vector<8x128xf32>
    %85 = tpu.matmul %74, %84, %cst_30 {dimension_numbers = #tpu.dot_dimension_numbers<[1], [0], [0], [1], [0, 0, 1, 1], [], []>} : vector<8x32xf32>, vector<32x128xf32>, vector<8x128xf32> -> vector<8x128xf32>
    %86 = arith.addf %82, %85 : vector<8x128xf32>
    %87 = arith.negf %86 : vector<8x128xf32>
    %88 = math.exp %87 : vector<8x128xf32>
    %cst_31 = arith.constant 1.000000e+00 : f32
    %89 = vector.broadcast %cst_31 : f32 to vector<8x128xf32>
    %90 = arith.addf %89, %88 : vector<8x128xf32>
    %91 = arith.divf %89, %90 : vector<8x128xf32>
    %92 = math.tanh %86 : vector<8x128xf32>
    %93 = vector.extract_strided_slice %91 {offsets = [0, 0], sizes = [8, 32], strides = [1, 1]} : vector<8x128xf32> to vector<8x32xf32>
    %94 = vector.extract_strided_slice %91 {offsets = [0, 32], sizes = [8, 32], strides = [1, 1]} : vector<8x128xf32> to vector<8x32xf32>
    %95 = vector.extract_strided_slice %91 {offsets = [0, 96], sizes = [8, 32], strides = [1, 1]} : vector<8x128xf32> to vector<8x32xf32>
    %96 = vector.extract_strided_slice %92 {offsets = [0, 64], sizes = [8, 32], strides = [1, 1]} : vector<8x128xf32> to vector<8x32xf32>
    %97 = arith.mulf %94, %77 : vector<8x32xf32>
    %98 = arith.mulf %93, %96 : vector<8x32xf32>
    %99 = arith.addf %97, %98 : vector<8x32xf32>
    %100 = math.tanh %99 : vector<8x32xf32>
    %101 = arith.mulf %95, %100 : vector<8x32xf32>
    %102 = vector.extract_strided_slice %4 {offsets = [2, 0, 0], sizes = [1, 8, 1], strides = [1, 1, 1]} : vector<8x8x1xi1> to vector<1x8x1xi1>
    %103 = vector.shape_cast %102 : vector<1x8x1xi1> to vector<8x1xi1>
    %104 = vector.shape_cast %103 : vector<8x1xi1> to vector<8x1xi1>
    %105 = vector.broadcast %104 : vector<8x1xi1> to vector<8x32xi1>
    %106 = arith.select %105, %101, %74 : vector<8x32xi1>, vector<8x32xf32>
    %107 = vector.shape_cast %103 : vector<8x1xi1> to vector<8x1xi1>
    %108 = vector.broadcast %107 : vector<8x1xi1> to vector<8x32xi1>
    %109 = arith.select %108, %99, %77 : vector<8x32xi1>, vector<8x32xf32>
    %c2 = arith.constant 2 : index
    %c0_32 = arith.constant 0 : index
    %c0_33 = arith.constant 0 : index
    %110 = vector.load %arg8[%c2, %c0_32, %c0_33] : memref<8x8x32xf32, #tpu.memory_space<vmem>>, vector<1x8x32xf32>
    %111 = vector.shape_cast %110 : vector<1x8x32xf32> to vector<8x32xf32>
    %112 = vector.shape_cast %106 : vector<8x32xf32> to vector<1x8x32xf32>
    tpu.vector_store %arg8[%c2, %c0_32, %c0_33], %112 {strides = array<i32>} : memref<8x8x32xf32, #tpu.memory_space<vmem>>, vector<1x8x32xf32>,
    %113 = vector.extract_strided_slice %14 {offsets = [3, 0, 0], sizes = [1, 8, 128], strides = [1, 1, 1]} : vector<8x8x128xf32> to vector<1x8x128xf32>
    %114 = vector.shape_cast %113 : vector<1x8x128xf32> to vector<8x128xf32>
    %c0_34 = arith.constant 0 : index
    %c0_35 = arith.constant 0 : index
    %c0_36 = arith.constant 0 : index
    %115 = vector.load %arg3[%c0_34, %c0_35, %c0_36] : memref<2x32x128xf32, #tpu.memory_space<vmem>>, vector<1x32x128xf32>
    %116 = vector.shape_cast %115 : vector<1x32x128xf32> to vector<32x128xf32>
    %cst_37 = arith.constant dense<0.000000e+00> : vector<8x128xf32>
    %117 = tpu.matmul %106, %116, %cst_37 {dimension_numbers = #tpu.dot_dimension_numbers<[1], [0], [0], [1], [0, 0, 1, 1], [], []>} : vector<8x32xf32>, vector<32x128xf32>, vector<8x128xf32> -> vector<8x128xf32>
    %118 = arith.addf %114, %117 : vector<8x128xf32>
    %119 = arith.negf %118 : vector<8x128xf32>
    %120 = math.exp %119 : vector<8x128xf32>
    %cst_38 = arith.constant 1.000000e+00 : f32
    %121 = vector.broadcast %cst_38 : f32 to vector<8x128xf32>
    %122 = arith.addf %121, %120 : vector<8x128xf32>
    %123 = arith.divf %121, %122 : vector<8x128xf32>
    %124 = math.tanh %118 : vector<8x128xf32>
    %125 = vector.extract_strided_slice %123 {offsets = [0, 0], sizes = [8, 32], strides = [1, 1]} : vector<8x128xf32> to vector<8x32xf32>
    %126 = vector.extract_strided_slice %123 {offsets = [0, 32], sizes = [8, 32], strides = [1, 1]} : vector<8x128xf32> to vector<8x32xf32>
    %127 = vector.extract_strided_slice %123 {offsets = [0, 96], sizes = [8, 32], strides = [1, 1]} : vector<8x128xf32> to vector<8x32xf32>
    %128 = vector.extract_strided_slice %124 {offsets = [0, 64], sizes = [8, 32], strides = [1, 1]} : vector<8x128xf32> to vector<8x32xf32>
    %129 = arith.mulf %126, %109 : vector<8x32xf32>
    %130 = arith.mulf %125, %128 : vector<8x32xf32>
    %131 = arith.addf %129, %130 : vector<8x32xf32>
    %132 = math.tanh %131 : vector<8x32xf32>
    %133 = arith.mulf %127, %132 : vector<8x32xf32>
    %134 = vector.extract_strided_slice %4 {offsets = [3, 0, 0], sizes = [1, 8, 1], strides = [1, 1, 1]} : vector<8x8x1xi1> to vector<1x8x1xi1>
    %135 = vector.shape_cast %134 : vector<1x8x1xi1> to vector<8x1xi1>
    %136 = vector.shape_cast %135 : vector<8x1xi1> to vector<8x1xi1>
    %137 = vector.broadcast %136 : vector<8x1xi1> to vector<8x32xi1>
    %138 = arith.select %137, %133, %106 : vector<8x32xi1>, vector<8x32xf32>
    %139 = vector.shape_cast %135 : vector<8x1xi1> to vector<8x1xi1>
    %140 = vector.broadcast %139 : vector<8x1xi1> to vector<8x32xi1>
    %141 = arith.select %140, %131, %109 : vector<8x32xi1>, vector<8x32xf32>
    %c3 = arith.constant 3 : index
    %c0_39 = arith.constant 0 : index
    %c0_40 = arith.constant 0 : index
    %142 = vector.load %arg8[%c3, %c0_39, %c0_40] : memref<8x8x32xf32, #tpu.memory_space<vmem>>, vector<1x8x32xf32>
    %143 = vector.shape_cast %142 : vector<1x8x32xf32> to vector<8x32xf32>
    %144 = vector.shape_cast %138 : vector<8x32xf32> to vector<1x8x32xf32>
    tpu.vector_store %arg8[%c3, %c0_39, %c0_40], %144 {strides = array<i32>} : memref<8x8x32xf32, #tpu.memory_space<vmem>>, vector<1x8x32xf32>,
    %145 = vector.extract_strided_slice %14 {offsets = [4, 0, 0], sizes = [1, 8, 128], strides = [1, 1, 1]} : vector<8x8x128xf32> to vector<1x8x128xf32>
    %146 = vector.shape_cast %145 : vector<1x8x128xf32> to vector<8x128xf32>
    %c0_41 = arith.constant 0 : index
    %c0_42 = arith.constant 0 : index
    %c0_43 = arith.constant 0 : index
    %147 = vector.load %arg3[%c0_41, %c0_42, %c0_43] : memref<2x32x128xf32, #tpu.memory_space<vmem>>, vector<1x32x128xf32>
    %148 = vector.shape_cast %147 : vector<1x32x128xf32> to vector<32x128xf32>
    %cst_44 = arith.constant dense<0.000000e+00> : vector<8x128xf32>
    %149 = tpu.matmul %138, %148, %cst_44 {dimension_numbers = #tpu.dot_dimension_numbers<[1], [0], [0], [1], [0, 0, 1, 1], [], []>} : vector<8x32xf32>, vector<32x128xf32>, vector<8x128xf32> -> vector<8x128xf32>
    %150 = arith.addf %146, %149 : vector<8x128xf32>
    %151 = arith.negf %150 : vector<8x128xf32>
    %152 = math.exp %151 : vector<8x128xf32>
    %cst_45 = arith.constant 1.000000e+00 : f32
    %153 = vector.broadcast %cst_45 : f32 to vector<8x128xf32>
    %154 = arith.addf %153, %152 : vector<8x128xf32>
    %155 = arith.divf %153, %154 : vector<8x128xf32>
    %156 = math.tanh %150 : vector<8x128xf32>
    %157 = vector.extract_strided_slice %155 {offsets = [0, 0], sizes = [8, 32], strides = [1, 1]} : vector<8x128xf32> to vector<8x32xf32>
    %158 = vector.extract_strided_slice %155 {offsets = [0, 32], sizes = [8, 32], strides = [1, 1]} : vector<8x128xf32> to vector<8x32xf32>
    %159 = vector.extract_strided_slice %155 {offsets = [0, 96], sizes = [8, 32], strides = [1, 1]} : vector<8x128xf32> to vector<8x32xf32>
    %160 = vector.extract_strided_slice %156 {offsets = [0, 64], sizes = [8, 32], strides = [1, 1]} : vector<8x128xf32> to vector<8x32xf32>
    %161 = arith.mulf %158, %141 : vector<8x32xf32>
    %162 = arith.mulf %157, %160 : vector<8x32xf32>
    %163 = arith.addf %161, %162 : vector<8x32xf32>
    %164 = math.tanh %163 : vector<8x32xf32>
    %165 = arith.mulf %159, %164 : vector<8x32xf32>
    %166 = vector.extract_strided_slice %4 {offsets = [4, 0, 0], sizes = [1, 8, 1], strides = [1, 1, 1]} : vector<8x8x1xi1> to vector<1x8x1xi1>
    %167 = vector.shape_cast %166 : vector<1x8x1xi1> to vector<8x1xi1>
    %168 = vector.shape_cast %167 : vector<8x1xi1> to vector<8x1xi1>
    %169 = vector.broadcast %168 : vector<8x1xi1> to vector<8x32xi1>
    %170 = arith.select %169, %165, %138 : vector<8x32xi1>, vector<8x32xf32>
    %171 = vector.shape_cast %167 : vector<8x1xi1> to vector<8x1xi1>
    %172 = vector.broadcast %171 : vector<8x1xi1> to vector<8x32xi1>
    %173 = arith.select %172, %163, %141 : vector<8x32xi1>, vector<8x32xf32>
    %c4 = arith.constant 4 : index
    %c0_46 = arith.constant 0 : index
    %c0_47 = arith.constant 0 : index
    %174 = vector.load %arg8[%c4, %c0_46, %c0_47] : memref<8x8x32xf32, #tpu.memory_space<vmem>>, vector<1x8x32xf32>
    %175 = vector.shape_cast %174 : vector<1x8x32xf32> to vector<8x32xf32>
    %176 = vector.shape_cast %170 : vector<8x32xf32> to vector<1x8x32xf32>
    tpu.vector_store %arg8[%c4, %c0_46, %c0_47], %176 {strides = array<i32>} : memref<8x8x32xf32, #tpu.memory_space<vmem>>, vector<1x8x32xf32>,
    %177 = vector.extract_strided_slice %14 {offsets = [5, 0, 0], sizes = [1, 8, 128], strides = [1, 1, 1]} : vector<8x8x128xf32> to vector<1x8x128xf32>
    %178 = vector.shape_cast %177 : vector<1x8x128xf32> to vector<8x128xf32>
    %c0_48 = arith.constant 0 : index
    %c0_49 = arith.constant 0 : index
    %c0_50 = arith.constant 0 : index
    %179 = vector.load %arg3[%c0_48, %c0_49, %c0_50] : memref<2x32x128xf32, #tpu.memory_space<vmem>>, vector<1x32x128xf32>
    %180 = vector.shape_cast %179 : vector<1x32x128xf32> to vector<32x128xf32>
    %cst_51 = arith.constant dense<0.000000e+00> : vector<8x128xf32>
    %181 = tpu.matmul %170, %180, %cst_51 {dimension_numbers = #tpu.dot_dimension_numbers<[1], [0], [0], [1], [0, 0, 1, 1], [], []>} : vector<8x32xf32>, vector<32x128xf32>, vector<8x128xf32> -> vector<8x128xf32>
    %182 = arith.addf %178, %181 : vector<8x128xf32>
    %183 = arith.negf %182 : vector<8x128xf32>
    %184 = math.exp %183 : vector<8x128xf32>
    %cst_52 = arith.constant 1.000000e+00 : f32
    %185 = vector.broadcast %cst_52 : f32 to vector<8x128xf32>
    %186 = arith.addf %185, %184 : vector<8x128xf32>
    %187 = arith.divf %185, %186 : vector<8x128xf32>
    %188 = math.tanh %182 : vector<8x128xf32>
    %189 = vector.extract_strided_slice %187 {offsets = [0, 0], sizes = [8, 32], strides = [1, 1]} : vector<8x128xf32> to vector<8x32xf32>
    %190 = vector.extract_strided_slice %187 {offsets = [0, 32], sizes = [8, 32], strides = [1, 1]} : vector<8x128xf32> to vector<8x32xf32>
    %191 = vector.extract_strided_slice %187 {offsets = [0, 96], sizes = [8, 32], strides = [1, 1]} : vector<8x128xf32> to vector<8x32xf32>
    %192 = vector.extract_strided_slice %188 {offsets = [0, 64], sizes = [8, 32], strides = [1, 1]} : vector<8x128xf32> to vector<8x32xf32>
    %193 = arith.mulf %190, %173 : vector<8x32xf32>
    %194 = arith.mulf %189, %192 : vector<8x32xf32>
    %195 = arith.addf %193, %194 : vector<8x32xf32>
    %196 = math.tanh %195 : vector<8x32xf32>
    %197 = arith.mulf %191, %196 : vector<8x32xf32>
    %198 = vector.extract_strided_slice %4 {offsets = [5, 0, 0], sizes = [1, 8, 1], strides = [1, 1, 1]} : vector<8x8x1xi1> to vector<1x8x1xi1>
    %199 = vector.shape_cast %198 : vector<1x8x1xi1> to vector<8x1xi1>
    %200 = vector.shape_cast %199 : vector<8x1xi1> to vector<8x1xi1>
    %201 = vector.broadcast %200 : vector<8x1xi1> to vector<8x32xi1>
    %202 = arith.select %201, %197, %170 : vector<8x32xi1>, vector<8x32xf32>
    %203 = vector.shape_cast %199 : vector<8x1xi1> to vector<8x1xi1>
    %204 = vector.broadcast %203 : vector<8x1xi1> to vector<8x32xi1>
    %205 = arith.select %204, %195, %173 : vector<8x32xi1>, vector<8x32xf32>
    %c5 = arith.constant 5 : index
    %c0_53 = arith.constant 0 : index
    %c0_54 = arith.constant 0 : index
    %206 = vector.load %arg8[%c5, %c0_53, %c0_54] : memref<8x8x32xf32, #tpu.memory_space<vmem>>, vector<1x8x32xf32>
    %207 = vector.shape_cast %206 : vector<1x8x32xf32> to vector<8x32xf32>
    %208 = vector.shape_cast %202 : vector<8x32xf32> to vector<1x8x32xf32>
    tpu.vector_store %arg8[%c5, %c0_53, %c0_54], %208 {strides = array<i32>} : memref<8x8x32xf32, #tpu.memory_space<vmem>>, vector<1x8x32xf32>,
    %209 = vector.extract_strided_slice %14 {offsets = [6, 0, 0], sizes = [1, 8, 128], strides = [1, 1, 1]} : vector<8x8x128xf32> to vector<1x8x128xf32>
    %210 = vector.shape_cast %209 : vector<1x8x128xf32> to vector<8x128xf32>
    %c0_55 = arith.constant 0 : index
    %c0_56 = arith.constant 0 : index
    %c0_57 = arith.constant 0 : index
    %211 = vector.load %arg3[%c0_55, %c0_56, %c0_57] : memref<2x32x128xf32, #tpu.memory_space<vmem>>, vector<1x32x128xf32>
    %212 = vector.shape_cast %211 : vector<1x32x128xf32> to vector<32x128xf32>
    %cst_58 = arith.constant dense<0.000000e+00> : vector<8x128xf32>
    %213 = tpu.matmul %202, %212, %cst_58 {dimension_numbers = #tpu.dot_dimension_numbers<[1], [0], [0], [1], [0, 0, 1, 1], [], []>} : vector<8x32xf32>, vector<32x128xf32>, vector<8x128xf32> -> vector<8x128xf32>
    %214 = arith.addf %210, %213 : vector<8x128xf32>
    %215 = arith.negf %214 : vector<8x128xf32>
    %216 = math.exp %215 : vector<8x128xf32>
    %cst_59 = arith.constant 1.000000e+00 : f32
    %217 = vector.broadcast %cst_59 : f32 to vector<8x128xf32>
    %218 = arith.addf %217, %216 : vector<8x128xf32>
    %219 = arith.divf %217, %218 : vector<8x128xf32>
    %220 = math.tanh %214 : vector<8x128xf32>
    %221 = vector.extract_strided_slice %219 {offsets = [0, 0], sizes = [8, 32], strides = [1, 1]} : vector<8x128xf32> to vector<8x32xf32>
    %222 = vector.extract_strided_slice %219 {offsets = [0, 32], sizes = [8, 32], strides = [1, 1]} : vector<8x128xf32> to vector<8x32xf32>
    %223 = vector.extract_strided_slice %219 {offsets = [0, 96], sizes = [8, 32], strides = [1, 1]} : vector<8x128xf32> to vector<8x32xf32>
    %224 = vector.extract_strided_slice %220 {offsets = [0, 64], sizes = [8, 32], strides = [1, 1]} : vector<8x128xf32> to vector<8x32xf32>
    %225 = arith.mulf %222, %205 : vector<8x32xf32>
    %226 = arith.mulf %221, %224 : vector<8x32xf32>
    %227 = arith.addf %225, %226 : vector<8x32xf32>
    %228 = math.tanh %227 : vector<8x32xf32>
    %229 = arith.mulf %223, %228 : vector<8x32xf32>
    %230 = vector.extract_strided_slice %4 {offsets = [6, 0, 0], sizes = [1, 8, 1], strides = [1, 1, 1]} : vector<8x8x1xi1> to vector<1x8x1xi1>
    %231 = vector.shape_cast %230 : vector<1x8x1xi1> to vector<8x1xi1>
    %232 = vector.shape_cast %231 : vector<8x1xi1> to vector<8x1xi1>
    %233 = vector.broadcast %232 : vector<8x1xi1> to vector<8x32xi1>
    %234 = arith.select %233, %229, %202 : vector<8x32xi1>, vector<8x32xf32>
    %235 = vector.shape_cast %231 : vector<8x1xi1> to vector<8x1xi1>
    %236 = vector.broadcast %235 : vector<8x1xi1> to vector<8x32xi1>
    %237 = arith.select %236, %227, %205 : vector<8x32xi1>, vector<8x32xf32>
    %c6 = arith.constant 6 : index
    %c0_60 = arith.constant 0 : index
    %c0_61 = arith.constant 0 : index
    %238 = vector.load %arg8[%c6, %c0_60, %c0_61] : memref<8x8x32xf32, #tpu.memory_space<vmem>>, vector<1x8x32xf32>
    %239 = vector.shape_cast %238 : vector<1x8x32xf32> to vector<8x32xf32>
    %240 = vector.shape_cast %234 : vector<8x32xf32> to vector<1x8x32xf32>
    tpu.vector_store %arg8[%c6, %c0_60, %c0_61], %240 {strides = array<i32>} : memref<8x8x32xf32, #tpu.memory_space<vmem>>, vector<1x8x32xf32>,
    %241 = vector.extract_strided_slice %14 {offsets = [7, 0, 0], sizes = [1, 8, 128], strides = [1, 1, 1]} : vector<8x8x128xf32> to vector<1x8x128xf32>
    %242 = vector.shape_cast %241 : vector<1x8x128xf32> to vector<8x128xf32>
    %c0_62 = arith.constant 0 : index
    %c0_63 = arith.constant 0 : index
    %c0_64 = arith.constant 0 : index
    %243 = vector.load %arg3[%c0_62, %c0_63, %c0_64] : memref<2x32x128xf32, #tpu.memory_space<vmem>>, vector<1x32x128xf32>
    %244 = vector.shape_cast %243 : vector<1x32x128xf32> to vector<32x128xf32>
    %cst_65 = arith.constant dense<0.000000e+00> : vector<8x128xf32>
    %245 = tpu.matmul %234, %244, %cst_65 {dimension_numbers = #tpu.dot_dimension_numbers<[1], [0], [0], [1], [0, 0, 1, 1], [], []>} : vector<8x32xf32>, vector<32x128xf32>, vector<8x128xf32> -> vector<8x128xf32>
    %246 = arith.addf %242, %245 : vector<8x128xf32>
    %247 = arith.negf %246 : vector<8x128xf32>
    %248 = math.exp %247 : vector<8x128xf32>
    %cst_66 = arith.constant 1.000000e+00 : f32
    %249 = vector.broadcast %cst_66 : f32 to vector<8x128xf32>
    %250 = arith.addf %249, %248 : vector<8x128xf32>
    %251 = arith.divf %249, %250 : vector<8x128xf32>
    %252 = math.tanh %246 : vector<8x128xf32>
    %253 = vector.extract_strided_slice %251 {offsets = [0, 0], sizes = [8, 32], strides = [1, 1]} : vector<8x128xf32> to vector<8x32xf32>
    %254 = vector.extract_strided_slice %251 {offsets = [0, 32], sizes = [8, 32], strides = [1, 1]} : vector<8x128xf32> to vector<8x32xf32>
    %255 = vector.extract_strided_slice %251 {offsets = [0, 96], sizes = [8, 32], strides = [1, 1]} : vector<8x128xf32> to vector<8x32xf32>
    %256 = vector.extract_strided_slice %252 {offsets = [0, 64], sizes = [8, 32], strides = [1, 1]} : vector<8x128xf32> to vector<8x32xf32>
    %257 = arith.mulf %254, %237 : vector<8x32xf32>
    %258 = arith.mulf %253, %256 : vector<8x32xf32>
    %259 = arith.addf %257, %258 : vector<8x32xf32>
    %260 = math.tanh %259 : vector<8x32xf32>
    %261 = arith.mulf %255, %260 : vector<8x32xf32>
    %262 = vector.extract_strided_slice %4 {offsets = [7, 0, 0], sizes = [1, 8, 1], strides = [1, 1, 1]} : vector<8x8x1xi1> to vector<1x8x1xi1>
    %263 = vector.shape_cast %262 : vector<1x8x1xi1> to vector<8x1xi1>
    %264 = vector.shape_cast %263 : vector<8x1xi1> to vector<8x1xi1>
    %265 = vector.broadcast %264 : vector<8x1xi1> to vector<8x32xi1>
    %266 = arith.select %265, %261, %234 : vector<8x32xi1>, vector<8x32xf32>
    %c7 = arith.constant 7 : index
    %c0_67 = arith.constant 0 : index
    %c0_68 = arith.constant 0 : index
    %267 = vector.load %arg8[%c7, %c0_67, %c0_68] : memref<8x8x32xf32, #tpu.memory_space<vmem>>, vector<1x8x32xf32>
    %268 = vector.shape_cast %267 : vector<1x8x32xf32> to vector<8x32xf32>
    %269 = vector.shape_cast %266 : vector<8x32xf32> to vector<1x8x32xf32>
    tpu.vector_store %arg8[%c7, %c0_67, %c0_68], %269 {strides = array<i32>} : memref<8x8x32xf32, #tpu.memory_space<vmem>>, vector<1x8x32xf32>,
    %c0_69 = arith.constant 0 : index
    %c0_70 = arith.constant 0 : index
    %c0_71 = arith.constant 0 : index
    %270 = vector.load %arg8[%c0_69, %c0_70, %c0_71] : memref<8x8x32xf32, #tpu.memory_space<vmem>>, vector<8x8x32xf32>
    %271 = vector.shape_cast %270 : vector<8x8x32xf32> to vector<64x32xf32>
    %c1_72 = arith.constant 1 : index
    %c0_73 = arith.constant 0 : index
    %c0_74 = arith.constant 0 : index
    %272 = vector.load %arg2[%c1_72, %c0_73, %c0_74] : memref<2x32x128xf32, #tpu.memory_space<vmem>>, vector<1x32x128xf32>
    %273 = vector.shape_cast %272 : vector<1x32x128xf32> to vector<32x128xf32>
    %cst_75 = arith.constant dense<0.000000e+00> : vector<64x128xf32>
    %274 = tpu.matmul %271, %273, %cst_75 {dimension_numbers = #tpu.dot_dimension_numbers<[1], [0], [0], [1], [0, 0, 1, 1], [], []>} : vector<64x32xf32>, vector<32x128xf32>, vector<64x128xf32> -> vector<64x128xf32>
    %c1_76 = arith.constant 1 : index
    %c0_77 = arith.constant 0 : index
    %c0_78 = arith.constant 0 : index
    %275 = vector.load %arg4[%c1_76, %c0_77, %c0_78] : memref<2x1x128xf32, #tpu.memory_space<vmem>>, vector<1x1x128xf32>
    %276 = vector.shape_cast %275 : vector<1x1x128xf32> to vector<1x128xf32>
    %277 = vector.broadcast %276 : vector<1x128xf32> to vector<64x128xf32>
    %278 = arith.addf %274, %277 : vector<64x128xf32>
    %279 = vector.shape_cast %278 : vector<64x128xf32> to vector<8x8x128xf32>
    %cst_79 = arith.constant 0.000000e+00 : f32
    %280 = vector.broadcast %cst_79 : f32 to vector<8x32xf32>
    %cst_80 = arith.constant 0.000000e+00 : f32
    %281 = vector.broadcast %cst_80 : f32 to vector<8x32xf32>
    %282 = vector.extract_strided_slice %279 {offsets = [0, 0, 0], sizes = [1, 8, 128], strides = [1, 1, 1]} : vector<8x8x128xf32> to vector<1x8x128xf32>
    %283 = vector.shape_cast %282 : vector<1x8x128xf32> to vector<8x128xf32>
    %c1_81 = arith.constant 1 : index
    %c0_82 = arith.constant 0 : index
    %c0_83 = arith.constant 0 : index
    %284 = vector.load %arg3[%c1_81, %c0_82, %c0_83] : memref<2x32x128xf32, #tpu.memory_space<vmem>>, vector<1x32x128xf32>
    %285 = vector.shape_cast %284 : vector<1x32x128xf32> to vector<32x128xf32>
    %cst_84 = arith.constant dense<0.000000e+00> : vector<8x128xf32>
    %286 = tpu.matmul %280, %285, %cst_84 {dimension_numbers = #tpu.dot_dimension_numbers<[1], [0], [0], [1], [0, 0, 1, 1], [], []>} : vector<8x32xf32>, vector<32x128xf32>, vector<8x128xf32> -> vector<8x128xf32>
    %287 = arith.addf %283, %286 : vector<8x128xf32>
    %288 = arith.negf %287 : vector<8x128xf32>
    %289 = math.exp %288 : vector<8x128xf32>
    %cst_85 = arith.constant 1.000000e+00 : f32
    %290 = vector.broadcast %cst_85 : f32 to vector<8x128xf32>
    %291 = arith.addf %290, %289 : vector<8x128xf32>
    %292 = arith.divf %290, %291 : vector<8x128xf32>
    %293 = math.tanh %287 : vector<8x128xf32>
    %294 = vector.extract_strided_slice %292 {offsets = [0, 0], sizes = [8, 32], strides = [1, 1]} : vector<8x128xf32> to vector<8x32xf32>
    %295 = vector.extract_strided_slice %292 {offsets = [0, 32], sizes = [8, 32], strides = [1, 1]} : vector<8x128xf32> to vector<8x32xf32>
    %296 = vector.extract_strided_slice %292 {offsets = [0, 96], sizes = [8, 32], strides = [1, 1]} : vector<8x128xf32> to vector<8x32xf32>
    %297 = vector.extract_strided_slice %293 {offsets = [0, 64], sizes = [8, 32], strides = [1, 1]} : vector<8x128xf32> to vector<8x32xf32>
    %298 = arith.mulf %295, %281 : vector<8x32xf32>
    %299 = arith.mulf %294, %297 : vector<8x32xf32>
    %300 = arith.addf %298, %299 : vector<8x32xf32>
    %301 = math.tanh %300 : vector<8x32xf32>
    %302 = arith.mulf %296, %301 : vector<8x32xf32>
    %303 = vector.extract_strided_slice %4 {offsets = [0, 0, 0], sizes = [1, 8, 1], strides = [1, 1, 1]} : vector<8x8x1xi1> to vector<1x8x1xi1>
    %304 = vector.shape_cast %303 : vector<1x8x1xi1> to vector<8x1xi1>
    %305 = vector.shape_cast %304 : vector<8x1xi1> to vector<8x1xi1>
    %306 = vector.broadcast %305 : vector<8x1xi1> to vector<8x32xi1>
    %307 = arith.select %306, %302, %280 : vector<8x32xi1>, vector<8x32xf32>
    %308 = vector.shape_cast %304 : vector<8x1xi1> to vector<8x1xi1>
    %309 = vector.broadcast %308 : vector<8x1xi1> to vector<8x32xi1>
    %310 = arith.select %309, %300, %281 : vector<8x32xi1>, vector<8x32xf32>
    %311 = vector.extract_strided_slice %279 {offsets = [1, 0, 0], sizes = [1, 8, 128], strides = [1, 1, 1]} : vector<8x8x128xf32> to vector<1x8x128xf32>
    %312 = vector.shape_cast %311 : vector<1x8x128xf32> to vector<8x128xf32>
    %c1_86 = arith.constant 1 : index
    %c0_87 = arith.constant 0 : index
    %c0_88 = arith.constant 0 : index
    %313 = vector.load %arg3[%c1_86, %c0_87, %c0_88] : memref<2x32x128xf32, #tpu.memory_space<vmem>>, vector<1x32x128xf32>
    %314 = vector.shape_cast %313 : vector<1x32x128xf32> to vector<32x128xf32>
    %cst_89 = arith.constant dense<0.000000e+00> : vector<8x128xf32>
    %315 = tpu.matmul %307, %314, %cst_89 {dimension_numbers = #tpu.dot_dimension_numbers<[1], [0], [0], [1], [0, 0, 1, 1], [], []>} : vector<8x32xf32>, vector<32x128xf32>, vector<8x128xf32> -> vector<8x128xf32>
    %316 = arith.addf %312, %315 : vector<8x128xf32>
    %317 = arith.negf %316 : vector<8x128xf32>
    %318 = math.exp %317 : vector<8x128xf32>
    %cst_90 = arith.constant 1.000000e+00 : f32
    %319 = vector.broadcast %cst_90 : f32 to vector<8x128xf32>
    %320 = arith.addf %319, %318 : vector<8x128xf32>
    %321 = arith.divf %319, %320 : vector<8x128xf32>
    %322 = math.tanh %316 : vector<8x128xf32>
    %323 = vector.extract_strided_slice %321 {offsets = [0, 0], sizes = [8, 32], strides = [1, 1]} : vector<8x128xf32> to vector<8x32xf32>
    %324 = vector.extract_strided_slice %321 {offsets = [0, 32], sizes = [8, 32], strides = [1, 1]} : vector<8x128xf32> to vector<8x32xf32>
    %325 = vector.extract_strided_slice %321 {offsets = [0, 96], sizes = [8, 32], strides = [1, 1]} : vector<8x128xf32> to vector<8x32xf32>
    %326 = vector.extract_strided_slice %322 {offsets = [0, 64], sizes = [8, 32], strides = [1, 1]} : vector<8x128xf32> to vector<8x32xf32>
    %327 = arith.mulf %324, %310 : vector<8x32xf32>
    %328 = arith.mulf %323, %326 : vector<8x32xf32>
    %329 = arith.addf %327, %328 : vector<8x32xf32>
    %330 = math.tanh %329 : vector<8x32xf32>
    %331 = arith.mulf %325, %330 : vector<8x32xf32>
    %332 = vector.extract_strided_slice %4 {offsets = [1, 0, 0], sizes = [1, 8, 1], strides = [1, 1, 1]} : vector<8x8x1xi1> to vector<1x8x1xi1>
    %333 = vector.shape_cast %332 : vector<1x8x1xi1> to vector<8x1xi1>
    %334 = vector.shape_cast %333 : vector<8x1xi1> to vector<8x1xi1>
    %335 = vector.broadcast %334 : vector<8x1xi1> to vector<8x32xi1>
    %336 = arith.select %335, %331, %307 : vector<8x32xi1>, vector<8x32xf32>
    %337 = vector.shape_cast %333 : vector<8x1xi1> to vector<8x1xi1>
    %338 = vector.broadcast %337 : vector<8x1xi1> to vector<8x32xi1>
    %339 = arith.select %338, %329, %310 : vector<8x32xi1>, vector<8x32xf32>
    %340 = vector.extract_strided_slice %279 {offsets = [2, 0, 0], sizes = [1, 8, 128], strides = [1, 1, 1]} : vector<8x8x128xf32> to vector<1x8x128xf32>
    %341 = vector.shape_cast %340 : vector<1x8x128xf32> to vector<8x128xf32>
    %c1_91 = arith.constant 1 : index
    %c0_92 = arith.constant 0 : index
    %c0_93 = arith.constant 0 : index
    %342 = vector.load %arg3[%c1_91, %c0_92, %c0_93] : memref<2x32x128xf32, #tpu.memory_space<vmem>>, vector<1x32x128xf32>
    %343 = vector.shape_cast %342 : vector<1x32x128xf32> to vector<32x128xf32>
    %cst_94 = arith.constant dense<0.000000e+00> : vector<8x128xf32>
    %344 = tpu.matmul %336, %343, %cst_94 {dimension_numbers = #tpu.dot_dimension_numbers<[1], [0], [0], [1], [0, 0, 1, 1], [], []>} : vector<8x32xf32>, vector<32x128xf32>, vector<8x128xf32> -> vector<8x128xf32>
    %345 = arith.addf %341, %344 : vector<8x128xf32>
    %346 = arith.negf %345 : vector<8x128xf32>
    %347 = math.exp %346 : vector<8x128xf32>
    %cst_95 = arith.constant 1.000000e+00 : f32
    %348 = vector.broadcast %cst_95 : f32 to vector<8x128xf32>
    %349 = arith.addf %348, %347 : vector<8x128xf32>
    %350 = arith.divf %348, %349 : vector<8x128xf32>
    %351 = math.tanh %345 : vector<8x128xf32>
    %352 = vector.extract_strided_slice %350 {offsets = [0, 0], sizes = [8, 32], strides = [1, 1]} : vector<8x128xf32> to vector<8x32xf32>
    %353 = vector.extract_strided_slice %350 {offsets = [0, 32], sizes = [8, 32], strides = [1, 1]} : vector<8x128xf32> to vector<8x32xf32>
    %354 = vector.extract_strided_slice %350 {offsets = [0, 96], sizes = [8, 32], strides = [1, 1]} : vector<8x128xf32> to vector<8x32xf32>
    %355 = vector.extract_strided_slice %351 {offsets = [0, 64], sizes = [8, 32], strides = [1, 1]} : vector<8x128xf32> to vector<8x32xf32>
    %356 = arith.mulf %353, %339 : vector<8x32xf32>
    %357 = arith.mulf %352, %355 : vector<8x32xf32>
    %358 = arith.addf %356, %357 : vector<8x32xf32>
    %359 = math.tanh %358 : vector<8x32xf32>
    %360 = arith.mulf %354, %359 : vector<8x32xf32>
    %361 = vector.extract_strided_slice %4 {offsets = [2, 0, 0], sizes = [1, 8, 1], strides = [1, 1, 1]} : vector<8x8x1xi1> to vector<1x8x1xi1>
    %362 = vector.shape_cast %361 : vector<1x8x1xi1> to vector<8x1xi1>
    %363 = vector.shape_cast %362 : vector<8x1xi1> to vector<8x1xi1>
    %364 = vector.broadcast %363 : vector<8x1xi1> to vector<8x32xi1>
    %365 = arith.select %364, %360, %336 : vector<8x32xi1>, vector<8x32xf32>
    %366 = vector.shape_cast %362 : vector<8x1xi1> to vector<8x1xi1>
    %367 = vector.broadcast %366 : vector<8x1xi1> to vector<8x32xi1>
    %368 = arith.select %367, %358, %339 : vector<8x32xi1>, vector<8x32xf32>
    %369 = vector.extract_strided_slice %279 {offsets = [3, 0, 0], sizes = [1, 8, 128], strides = [1, 1, 1]} : vector<8x8x128xf32> to vector<1x8x128xf32>
    %370 = vector.shape_cast %369 : vector<1x8x128xf32> to vector<8x128xf32>
    %c1_96 = arith.constant 1 : index
    %c0_97 = arith.constant 0 : index
    %c0_98 = arith.constant 0 : index
    %371 = vector.load %arg3[%c1_96, %c0_97, %c0_98] : memref<2x32x128xf32, #tpu.memory_space<vmem>>, vector<1x32x128xf32>
    %372 = vector.shape_cast %371 : vector<1x32x128xf32> to vector<32x128xf32>
    %cst_99 = arith.constant dense<0.000000e+00> : vector<8x128xf32>
    %373 = tpu.matmul %365, %372, %cst_99 {dimension_numbers = #tpu.dot_dimension_numbers<[1], [0], [0], [1], [0, 0, 1, 1], [], []>} : vector<8x32xf32>, vector<32x128xf32>, vector<8x128xf32> -> vector<8x128xf32>
    %374 = arith.addf %370, %373 : vector<8x128xf32>
    %375 = arith.negf %374 : vector<8x128xf32>
    %376 = math.exp %375 : vector<8x128xf32>
    %cst_100 = arith.constant 1.000000e+00 : f32
    %377 = vector.broadcast %cst_100 : f32 to vector<8x128xf32>
    %378 = arith.addf %377, %376 : vector<8x128xf32>
    %379 = arith.divf %377, %378 : vector<8x128xf32>
    %380 = math.tanh %374 : vector<8x128xf32>
    %381 = vector.extract_strided_slice %379 {offsets = [0, 0], sizes = [8, 32], strides = [1, 1]} : vector<8x128xf32> to vector<8x32xf32>
    %382 = vector.extract_strided_slice %379 {offsets = [0, 32], sizes = [8, 32], strides = [1, 1]} : vector<8x128xf32> to vector<8x32xf32>
    %383 = vector.extract_strided_slice %379 {offsets = [0, 96], sizes = [8, 32], strides = [1, 1]} : vector<8x128xf32> to vector<8x32xf32>
    %384 = vector.extract_strided_slice %380 {offsets = [0, 64], sizes = [8, 32], strides = [1, 1]} : vector<8x128xf32> to vector<8x32xf32>
    %385 = arith.mulf %382, %368 : vector<8x32xf32>
    %386 = arith.mulf %381, %384 : vector<8x32xf32>
    %387 = arith.addf %385, %386 : vector<8x32xf32>
    %388 = math.tanh %387 : vector<8x32xf32>
    %389 = arith.mulf %383, %388 : vector<8x32xf32>
    %390 = vector.extract_strided_slice %4 {offsets = [3, 0, 0], sizes = [1, 8, 1], strides = [1, 1, 1]} : vector<8x8x1xi1> to vector<1x8x1xi1>
    %391 = vector.shape_cast %390 : vector<1x8x1xi1> to vector<8x1xi1>
    %392 = vector.shape_cast %391 : vector<8x1xi1> to vector<8x1xi1>
    %393 = vector.broadcast %392 : vector<8x1xi1> to vector<8x32xi1>
    %394 = arith.select %393, %389, %365 : vector<8x32xi1>, vector<8x32xf32>
    %395 = vector.shape_cast %391 : vector<8x1xi1> to vector<8x1xi1>
    %396 = vector.broadcast %395 : vector<8x1xi1> to vector<8x32xi1>
    %397 = arith.select %396, %387, %368 : vector<8x32xi1>, vector<8x32xf32>
    %398 = vector.extract_strided_slice %279 {offsets = [4, 0, 0], sizes = [1, 8, 128], strides = [1, 1, 1]} : vector<8x8x128xf32> to vector<1x8x128xf32>
    %399 = vector.shape_cast %398 : vector<1x8x128xf32> to vector<8x128xf32>
    %c1_101 = arith.constant 1 : index
    %c0_102 = arith.constant 0 : index
    %c0_103 = arith.constant 0 : index
    %400 = vector.load %arg3[%c1_101, %c0_102, %c0_103] : memref<2x32x128xf32, #tpu.memory_space<vmem>>, vector<1x32x128xf32>
    %401 = vector.shape_cast %400 : vector<1x32x128xf32> to vector<32x128xf32>
    %cst_104 = arith.constant dense<0.000000e+00> : vector<8x128xf32>
    %402 = tpu.matmul %394, %401, %cst_104 {dimension_numbers = #tpu.dot_dimension_numbers<[1], [0], [0], [1], [0, 0, 1, 1], [], []>} : vector<8x32xf32>, vector<32x128xf32>, vector<8x128xf32> -> vector<8x128xf32>
    %403 = arith.addf %399, %402 : vector<8x128xf32>
    %404 = arith.negf %403 : vector<8x128xf32>
    %405 = math.exp %404 : vector<8x128xf32>
    %cst_105 = arith.constant 1.000000e+00 : f32
    %406 = vector.broadcast %cst_105 : f32 to vector<8x128xf32>
    %407 = arith.addf %406, %405 : vector<8x128xf32>
    %408 = arith.divf %406, %407 : vector<8x128xf32>
    %409 = math.tanh %403 : vector<8x128xf32>
    %410 = vector.extract_strided_slice %408 {offsets = [0, 0], sizes = [8, 32], strides = [1, 1]} : vector<8x128xf32> to vector<8x32xf32>
    %411 = vector.extract_strided_slice %408 {offsets = [0, 32], sizes = [8, 32], strides = [1, 1]} : vector<8x128xf32> to vector<8x32xf32>
    %412 = vector.extract_strided_slice %408 {offsets = [0, 96], sizes = [8, 32], strides = [1, 1]} : vector<8x128xf32> to vector<8x32xf32>
    %413 = vector.extract_strided_slice %409 {offsets = [0, 64], sizes = [8, 32], strides = [1, 1]} : vector<8x128xf32> to vector<8x32xf32>
    %414 = arith.mulf %411, %397 : vector<8x32xf32>
    %415 = arith.mulf %410, %413 : vector<8x32xf32>
    %416 = arith.addf %414, %415 : vector<8x32xf32>
    %417 = math.tanh %416 : vector<8x32xf32>
    %418 = arith.mulf %412, %417 : vector<8x32xf32>
    %419 = vector.extract_strided_slice %4 {offsets = [4, 0, 0], sizes = [1, 8, 1], strides = [1, 1, 1]} : vector<8x8x1xi1> to vector<1x8x1xi1>
    %420 = vector.shape_cast %419 : vector<1x8x1xi1> to vector<8x1xi1>
    %421 = vector.shape_cast %420 : vector<8x1xi1> to vector<8x1xi1>
    %422 = vector.broadcast %421 : vector<8x1xi1> to vector<8x32xi1>
    %423 = arith.select %422, %418, %394 : vector<8x32xi1>, vector<8x32xf32>
    %424 = vector.shape_cast %420 : vector<8x1xi1> to vector<8x1xi1>
    %425 = vector.broadcast %424 : vector<8x1xi1> to vector<8x32xi1>
    %426 = arith.select %425, %416, %397 : vector<8x32xi1>, vector<8x32xf32>
    %427 = vector.extract_strided_slice %279 {offsets = [5, 0, 0], sizes = [1, 8, 128], strides = [1, 1, 1]} : vector<8x8x128xf32> to vector<1x8x128xf32>
    %428 = vector.shape_cast %427 : vector<1x8x128xf32> to vector<8x128xf32>
    %c1_106 = arith.constant 1 : index
    %c0_107 = arith.constant 0 : index
    %c0_108 = arith.constant 0 : index
    %429 = vector.load %arg3[%c1_106, %c0_107, %c0_108] : memref<2x32x128xf32, #tpu.memory_space<vmem>>, vector<1x32x128xf32>
    %430 = vector.shape_cast %429 : vector<1x32x128xf32> to vector<32x128xf32>
    %cst_109 = arith.constant dense<0.000000e+00> : vector<8x128xf32>
    %431 = tpu.matmul %423, %430, %cst_109 {dimension_numbers = #tpu.dot_dimension_numbers<[1], [0], [0], [1], [0, 0, 1, 1], [], []>} : vector<8x32xf32>, vector<32x128xf32>, vector<8x128xf32> -> vector<8x128xf32>
    %432 = arith.addf %428, %431 : vector<8x128xf32>
    %433 = arith.negf %432 : vector<8x128xf32>
    %434 = math.exp %433 : vector<8x128xf32>
    %cst_110 = arith.constant 1.000000e+00 : f32
    %435 = vector.broadcast %cst_110 : f32 to vector<8x128xf32>
    %436 = arith.addf %435, %434 : vector<8x128xf32>
    %437 = arith.divf %435, %436 : vector<8x128xf32>
    %438 = math.tanh %432 : vector<8x128xf32>
    %439 = vector.extract_strided_slice %437 {offsets = [0, 0], sizes = [8, 32], strides = [1, 1]} : vector<8x128xf32> to vector<8x32xf32>
    %440 = vector.extract_strided_slice %437 {offsets = [0, 32], sizes = [8, 32], strides = [1, 1]} : vector<8x128xf32> to vector<8x32xf32>
    %441 = vector.extract_strided_slice %437 {offsets = [0, 96], sizes = [8, 32], strides = [1, 1]} : vector<8x128xf32> to vector<8x32xf32>
    %442 = vector.extract_strided_slice %438 {offsets = [0, 64], sizes = [8, 32], strides = [1, 1]} : vector<8x128xf32> to vector<8x32xf32>
    %443 = arith.mulf %440, %426 : vector<8x32xf32>
    %444 = arith.mulf %439, %442 : vector<8x32xf32>
    %445 = arith.addf %443, %444 : vector<8x32xf32>
    %446 = math.tanh %445 : vector<8x32xf32>
    %447 = arith.mulf %441, %446 : vector<8x32xf32>
    %448 = vector.extract_strided_slice %4 {offsets = [5, 0, 0], sizes = [1, 8, 1], strides = [1, 1, 1]} : vector<8x8x1xi1> to vector<1x8x1xi1>
    %449 = vector.shape_cast %448 : vector<1x8x1xi1> to vector<8x1xi1>
    %450 = vector.shape_cast %449 : vector<8x1xi1> to vector<8x1xi1>
    %451 = vector.broadcast %450 : vector<8x1xi1> to vector<8x32xi1>
    %452 = arith.select %451, %447, %423 : vector<8x32xi1>, vector<8x32xf32>
    %453 = vector.shape_cast %449 : vector<8x1xi1> to vector<8x1xi1>
    %454 = vector.broadcast %453 : vector<8x1xi1> to vector<8x32xi1>
    %455 = arith.select %454, %445, %426 : vector<8x32xi1>, vector<8x32xf32>
    %456 = vector.extract_strided_slice %279 {offsets = [6, 0, 0], sizes = [1, 8, 128], strides = [1, 1, 1]} : vector<8x8x128xf32> to vector<1x8x128xf32>
    %457 = vector.shape_cast %456 : vector<1x8x128xf32> to vector<8x128xf32>
    %c1_111 = arith.constant 1 : index
    %c0_112 = arith.constant 0 : index
    %c0_113 = arith.constant 0 : index
    %458 = vector.load %arg3[%c1_111, %c0_112, %c0_113] : memref<2x32x128xf32, #tpu.memory_space<vmem>>, vector<1x32x128xf32>
    %459 = vector.shape_cast %458 : vector<1x32x128xf32> to vector<32x128xf32>
    %cst_114 = arith.constant dense<0.000000e+00> : vector<8x128xf32>
    %460 = tpu.matmul %452, %459, %cst_114 {dimension_numbers = #tpu.dot_dimension_numbers<[1], [0], [0], [1], [0, 0, 1, 1], [], []>} : vector<8x32xf32>, vector<32x128xf32>, vector<8x128xf32> -> vector<8x128xf32>
    %461 = arith.addf %457, %460 : vector<8x128xf32>
    %462 = arith.negf %461 : vector<8x128xf32>
    %463 = math.exp %462 : vector<8x128xf32>
    %cst_115 = arith.constant 1.000000e+00 : f32
    %464 = vector.broadcast %cst_115 : f32 to vector<8x128xf32>
    %465 = arith.addf %464, %463 : vector<8x128xf32>
    %466 = arith.divf %464, %465 : vector<8x128xf32>
    %467 = math.tanh %461 : vector<8x128xf32>
    %468 = vector.extract_strided_slice %466 {offsets = [0, 0], sizes = [8, 32], strides = [1, 1]} : vector<8x128xf32> to vector<8x32xf32>
    %469 = vector.extract_strided_slice %466 {offsets = [0, 32], sizes = [8, 32], strides = [1, 1]} : vector<8x128xf32> to vector<8x32xf32>
    %470 = vector.extract_strided_slice %466 {offsets = [0, 96], sizes = [8, 32], strides = [1, 1]} : vector<8x128xf32> to vector<8x32xf32>
    %471 = vector.extract_strided_slice %467 {offsets = [0, 64], sizes = [8, 32], strides = [1, 1]} : vector<8x128xf32> to vector<8x32xf32>
    %472 = arith.mulf %469, %455 : vector<8x32xf32>
    %473 = arith.mulf %468, %471 : vector<8x32xf32>
    %474 = arith.addf %472, %473 : vector<8x32xf32>
    %475 = math.tanh %474 : vector<8x32xf32>
    %476 = arith.mulf %470, %475 : vector<8x32xf32>
    %477 = vector.extract_strided_slice %4 {offsets = [6, 0, 0], sizes = [1, 8, 1], strides = [1, 1, 1]} : vector<8x8x1xi1> to vector<1x8x1xi1>
    %478 = vector.shape_cast %477 : vector<1x8x1xi1> to vector<8x1xi1>
    %479 = vector.shape_cast %478 : vector<8x1xi1> to vector<8x1xi1>
    %480 = vector.broadcast %479 : vector<8x1xi1> to vector<8x32xi1>
    %481 = arith.select %480, %476, %452 : vector<8x32xi1>, vector<8x32xf32>
    %482 = vector.shape_cast %478 : vector<8x1xi1> to vector<8x1xi1>
    %483 = vector.broadcast %482 : vector<8x1xi1> to vector<8x32xi1>
    %484 = arith.select %483, %474, %455 : vector<8x32xi1>, vector<8x32xf32>
    %485 = vector.extract_strided_slice %279 {offsets = [7, 0, 0], sizes = [1, 8, 128], strides = [1, 1, 1]} : vector<8x8x128xf32> to vector<1x8x128xf32>
    %486 = vector.shape_cast %485 : vector<1x8x128xf32> to vector<8x128xf32>
    %c1_116 = arith.constant 1 : index
    %c0_117 = arith.constant 0 : index
    %c0_118 = arith.constant 0 : index
    %487 = vector.load %arg3[%c1_116, %c0_117, %c0_118] : memref<2x32x128xf32, #tpu.memory_space<vmem>>, vector<1x32x128xf32>
    %488 = vector.shape_cast %487 : vector<1x32x128xf32> to vector<32x128xf32>
    %cst_119 = arith.constant dense<0.000000e+00> : vector<8x128xf32>
    %489 = tpu.matmul %481, %488, %cst_119 {dimension_numbers = #tpu.dot_dimension_numbers<[1], [0], [0], [1], [0, 0, 1, 1], [], []>} : vector<8x32xf32>, vector<32x128xf32>, vector<8x128xf32> -> vector<8x128xf32>
    %490 = arith.addf %486, %489 : vector<8x128xf32>
    %491 = arith.negf %490 : vector<8x128xf32>
    %492 = math.exp %491 : vector<8x128xf32>
    %cst_120 = arith.constant 1.000000e+00 : f32
    %493 = vector.broadcast %cst_120 : f32 to vector<8x128xf32>
    %494 = arith.addf %493, %492 : vector<8x128xf32>
    %495 = arith.divf %493, %494 : vector<8x128xf32>
    %496 = math.tanh %490 : vector<8x128xf32>
    %497 = vector.extract_strided_slice %495 {offsets = [0, 0], sizes = [8, 32], strides = [1, 1]} : vector<8x128xf32> to vector<8x32xf32>
    %498 = vector.extract_strided_slice %495 {offsets = [0, 32], sizes = [8, 32], strides = [1, 1]} : vector<8x128xf32> to vector<8x32xf32>
    %499 = vector.extract_strided_slice %495 {offsets = [0, 96], sizes = [8, 32], strides = [1, 1]} : vector<8x128xf32> to vector<8x32xf32>
    %500 = vector.extract_strided_slice %496 {offsets = [0, 64], sizes = [8, 32], strides = [1, 1]} : vector<8x128xf32> to vector<8x32xf32>
    %501 = arith.mulf %498, %484 : vector<8x32xf32>
    %502 = arith.mulf %497, %500 : vector<8x32xf32>
    %503 = arith.addf %501, %502 : vector<8x32xf32>
    %504 = math.tanh %503 : vector<8x32xf32>
    %505 = arith.mulf %499, %504 : vector<8x32xf32>
    %506 = vector.extract_strided_slice %4 {offsets = [7, 0, 0], sizes = [1, 8, 1], strides = [1, 1, 1]} : vector<8x8x1xi1> to vector<1x8x1xi1>
    %507 = vector.shape_cast %506 : vector<1x8x1xi1> to vector<8x1xi1>
    %508 = vector.shape_cast %507 : vector<8x1xi1> to vector<8x1xi1>
    %509 = vector.broadcast %508 : vector<8x1xi1> to vector<8x32xi1>
    %510 = arith.select %509, %505, %481 : vector<8x32xi1>, vector<8x32xf32>
    %c0_121 = arith.constant 0 : index
    %c0_122 = arith.constant 0 : index
    %511 = vector.load %arg5[%c0_121, %c0_122] : memref<32x1xf32, #tpu.memory_space<vmem>>, vector<32x1xf32>
    %cst_123 = arith.constant dense<0.000000e+00> : vector<8x1xf32>
    %512 = tpu.matmul %510, %511, %cst_123 {dimension_numbers = #tpu.dot_dimension_numbers<[1], [0], [0], [1], [0, 0, 1, 1], [], []>} : vector<8x32xf32>, vector<32x1xf32>, vector<8x1xf32> -> vector<8x1xf32>
    %c0_124 = arith.constant 0 : index
    %c0_125 = arith.constant 0 : index
    %513 = vector.load %arg6[%c0_124, %c0_125] : memref<1x1xf32, #tpu.memory_space<vmem>>, vector<1x1xf32>
    %514 = vector.broadcast %513 : vector<1x1xf32> to vector<8x1xf32>
    %515 = arith.addf %512, %514 : vector<8x1xf32>
    %516 = arith.negf %515 : vector<8x1xf32>
    %517 = math.exp %516 : vector<8x1xf32>
    %cst_126 = arith.constant 1.000000e+00 : f32
    %518 = vector.broadcast %cst_126 : f32 to vector<8x1xf32>
    %519 = arith.addf %518, %517 : vector<8x1xf32>
    %520 = arith.divf %518, %519 : vector<8x1xf32>
    %c0_127 = arith.constant 0 : index
    %c0_128 = arith.constant 0 : index
    %521 = vector.load %arg7[%c0_127, %c0_128] : memref<8x1xf32, #tpu.memory_space<vmem>>, vector<8x1xf32>
    tpu.vector_store %arg7[%c0_127, %c0_128], %520 {strides = array<i32>} : memref<8x1xf32, #tpu.memory_space<vmem>>, vector<8x1xf32>,
    return
  }
}

</mosaic_0001>

<llo_original>
// kernel: tpu_custom_call.1
$region0: #{tpu_custom_call.1}
  #allocation0 [shape = 'u32[]', space=smem, size = 0x4, offset = 0x4, fixed_abs, tag = 'smem constant byte address 0x4 - core index']
  #allocation1 [shape = 'u32[144,128]{1,0:T(1,128)}', space=vmem, size = 0x12000, scoped, tag = 'internal scratch']
  #allocation2 [shape = 'f32[8,8,32]{2,1,0:T(8,128)}', space=vmem, size = 0x8000, scoped, tag = 'scratch operand']
  #allocation3 [shape = 'f32[1,1]{1,0:T(1,128)S(1)}', space=vmem, size = 0x200, scoped, tag = 'scoped memory for tpu_custom_call.1']
  %s0 = inlined_call_operand.hbm [shape: f32[8,8,32], index: 0, kind: input, shape index: {}]
  %s1 = inlined_call_operand.vmem [shape: s32[8,1], index: 1, kind: input, shape index: {}]
  %s2 = inlined_call_operand.hbm [shape: f32[2,32,128], index: 2, kind: input, shape index: {}]
  %s3 = inlined_call_operand.hbm [shape: f32[2,32,128], index: 3, kind: input, shape index: {}]
  %s4 = inlined_call_operand.vmem [shape: f32[2,1,128], index: 4, kind: input, shape index: {}]
  %s5 = inlined_call_operand.vmem [shape: f32[32,1], index: 5, kind: input, shape index: {}]
  %s6 = inlined_call_operand.<no memory space> [shape: f32[1,1], index: 6, kind: input, shape index: {}]
  %s7 = inlined_call_operand.vmem [shape: f32[8,1], index: 7, kind: output, shape index: {}]
  %s8 = sld [smem:[#allocation0]]
  $region50: #{tpu_custom_call.1} parent=0
    _
  %s10 = ssub.s32 1, %s8
  %s11 = scalar_select 0, %s10, %s8
  %v12 = vstv %s6
  %13 = vst [vmem:[#allocation3] sm:$0x1] %v12
  $region1: #{tpu_custom_call.1} parent=0
    #allocation4 [shape = 'u8[32768]{0}', space=vmem, size = 0x8000, scoped, tag = 'input window, operand 0, single buffered']
    #allocation5 [shape = 's32[1]{0}', space=sflag, size = 0x4, scoped, tag = 'scoped memory for tpu_custom_call.1']
    #allocation6 [shape = 'u8[32768]{0}', space=vmem, size = 0x8000, scoped, tag = 'input window, operand 2, single buffered']
    #allocation7 [shape = 's32[1]{0}', space=sflag, size = 0x4, scoped, tag = 'scoped memory for tpu_custom_call.1']
    #allocation8 [shape = 'u8[32768]{0}', space=vmem, size = 0x8000, scoped, tag = 'input window, operand 3, single buffered']
    %14 = vsyncpa [#allocation5], 0
    %15 = vsyncpa [#allocation7], 0
    // Predicated region
    $region2: #{tpu_custom_call.1} parent=1 // pred_check
      _
    $region3: #{tpu_custom_call.1} parent=1 // pred_check_branch
      %17 = sbr.rel (0) target = $region5
    $region4: #{tpu_custom_call.1} parent=1 // pred_region
      %s19 = ssub.s32 1024, 1024
      %20 = vsyncadd [#allocation5], %s19
      %s21 = sshll.u32 [#allocation4], 4
      %s22 = int_to_ptr.vmem [resolvable:$true] %s21
      %27 = dma.hbm_to_vmem [thread:$0]  %s0, 1024, %s22, [#allocation5], 128, 128, 8
    $region5: #{tpu_custom_call.1} parent=1 // pred_fallthru
      _
    // Predicated region
    $region6: #{tpu_custom_call.1} parent=1 // pred_check
      _
    $region7: #{tpu_custom_call.1} parent=1 // pred_check_branch
      %29 = sbr.rel (0) target = $region9
    $region8: #{tpu_custom_call.1} parent=1 // pred_region
      _
    $region9: #{tpu_custom_call.1} parent=1 // pred_fallthru
      _
    // Predicated region
    $region10: #{tpu_custom_call.1} parent=1 // pred_check
      _
    $region11: #{tpu_custom_call.1} parent=1 // pred_check_branch
      %31 = sbr.rel (0) target = $region13
    $region12: #{tpu_custom_call.1} parent=1 // pred_region
      %s33 = ssub.s32 1024, 1024
      %34 = vsyncadd [#allocation7], %s33
      %s35 = sshll.u32 [#allocation6], 4
      %s36 = int_to_ptr.vmem [resolvable:$true] %s35
      %41 = dma.hbm_to_vmem [thread:$0]  %s2, 1024, %s36, [#allocation7], 128, 128, 8
    $region13: #{tpu_custom_call.1} parent=1 // pred_fallthru
      _
    // Predicated region
    $region14: #{tpu_custom_call.1} parent=1 // pred_check
      _
    $region15: #{tpu_custom_call.1} parent=1 // pred_check_branch
      %43 = sbr.rel (0) target = $region17
    $region16: #{tpu_custom_call.1} parent=1 // pred_region
      %s45 = ssub.s32 1024, 1024
      %46 = vsyncadd [#allocation7], %s45
      %s47 = sshll.u32 [#allocation8], 4
      %s48 = int_to_ptr.vmem [resolvable:$true] %s47
      %53 = dma.hbm_to_vmem [thread:$0]  %s3, 1024, %s48, [#allocation7], 128, 128, 8
    $region17: #{tpu_custom_call.1} parent=1 // pred_fallthru
      _
    // Predicated region
    $region18: #{tpu_custom_call.1} parent=1 // pred_check
      _
    $region19: #{tpu_custom_call.1} parent=1 // pred_check_branch
      %55 = sbr.rel (0) target = $region21
    $region20: #{tpu_custom_call.1} parent=1 // pred_region
      _
    $region21: #{tpu_custom_call.1} parent=1 // pred_fallthru
      _
    // Predicated region
    $region22: #{tpu_custom_call.1} parent=1 // pred_check
      _
    $region23: #{tpu_custom_call.1} parent=1 // pred_check_branch
      %57 = sbr.rel (0) target = $region25
    $region24: #{tpu_custom_call.1} parent=1 // pred_region
      _
    $region25: #{tpu_custom_call.1} parent=1 // pred_fallthru
      _
    // Predicated region
    $region26: #{tpu_custom_call.1} parent=1 // pred_check
      _
    $region27: #{tpu_custom_call.1} parent=1 // pred_check_branch
      %59 = sbr.rel (0) target = $region29
    $region28: #{tpu_custom_call.1} parent=1 // pred_region
      _
    $region29: #{tpu_custom_call.1} parent=1 // pred_fallthru
      _
    // Predicated region
    $region30: #{tpu_custom_call.1} parent=1 // pred_check
      _
    $region31: #{tpu_custom_call.1} parent=1 // pred_check_branch
      %61 = sbr.rel (0) target = $region33
    $region32: #{tpu_custom_call.1} parent=1 // pred_region
      %62 = dma.done [#allocation5], 1024
    $region33: #{tpu_custom_call.1} parent=1 // pred_fallthru
      _
    // Predicated region
    $region34: #{tpu_custom_call.1} parent=1 // pred_check
      _
    $region35: #{tpu_custom_call.1} parent=1 // pred_check_branch
      %64 = sbr.rel (0) target = $region37
    $region36: #{tpu_custom_call.1} parent=1 // pred_region
      %65 = dma.done [#allocation7], 1024
    $region37: #{tpu_custom_call.1} parent=1 // pred_fallthru
      _
    // Predicated region
    $region38: #{tpu_custom_call.1} parent=1 // pred_check
      _
    $region39: #{tpu_custom_call.1} parent=1 // pred_check_branch
      %67 = sbr.rel (0) target = $region41
    $region40: #{tpu_custom_call.1} parent=1 // pred_region
      %68 = dma.done [#allocation7], 1024
    $region41: #{tpu_custom_call.1} parent=1 // pred_fallthru
      _
    %v69 = vld [vmem:[%s1] sm:$0xff]
    %vm70 = vcmp.gt.s32.totalorder %v69, 0
    %vm71 = vcmp.gt.s32.totalorder %v69, 1
    %vm72 = vcmp.gt.s32.totalorder %v69, 2
    %vm73 = vcmp.gt.s32.totalorder %v69, 3
    %vm74 = vcmp.gt.s32.totalorder %v69, 4
    %vm75 = vcmp.gt.s32.totalorder %v69, 5
    %vm76 = vcmp.gt.s32.totalorder %v69, 6
    %vm77 = vcmp.gt.s32.totalorder %v69, 7
    %v78 = vld [vmem:[#allocation4] sm:$0xff]
    %v79 = vld [vmem:[#allocation4 + $0x8] sm:$0xff]
    %v80 = vld [vmem:[#allocation4 + $0x10] sm:$0xff]
    %v81 = vld [vmem:[#allocation4 + $0x18] sm:$0xff]
    %v82 = vld [vmem:[#allocation4 + $0x20] sm:$0xff]
    %v83 = vld [vmem:[#allocation4 + $0x28] sm:$0xff]
    %v84 = vld [vmem:[#allocation4 + $0x30] sm:$0xff]
    %v85 = vld [vmem:[#allocation4 + $0x38] sm:$0xff]
    %v86 = vld [vmem:[#allocation6] sm:$0xff]
    %v87 = vld [vmem:[#allocation6 + $0x8] sm:$0xff]
    %v88 = vld [vmem:[#allocation6 + $0x10] sm:$0xff]
    %v89 = vld [vmem:[#allocation6 + $0x18] sm:$0xff]
    %v90 = vld [vmem:[%s4] sm:$0x1]
    %v92 = vlaneseq
    %v93 = vshrl.u32 %v92, 7
    %v94 = vsub.s32 0, %v93
    %v95 = vrot.slane %v90, %v94
    %vm97 = vcmask 261120
    %v99 = vsel %vm97, %v78, 0
    %v102 = vsel %vm97, %v79, 0
    %v105 = vsel %vm97, %v80, 0
    %v108 = vsel %vm97, %v81, 0
    %v111 = vsel %vm97, %v82, 0
    %v114 = vsel %vm97, %v83, 0
    %v117 = vsel %vm97, %v84, 0
    %v120 = vsel %vm97, %v85, 0
    %122 = vmatprep.subr.mxu0 0.0
    %123 = vmatpush1.msra.mxu0 0.0
    %124 = vmatprep.subr.mxu0 0.0
    %125 = vmatpush1.msra.mxu0 0.0
    %126 = vmatprep.subr.mxu0 0.0
    %127 = vmatpush1.msra.mxu0 0.0
    %128 = vmatprep.subr.mxu0 0.0
    %129 = vmatpush1.msra.mxu0 0.0
    %130 = vmatprep.subr.mxu0 0.0
    %131 = vmatpush1.msra.mxu0 0.0
    %132 = vmatprep.subr.mxu0 0.0
    %133 = vmatpush1.msra.mxu0 0.0
    %134 = vmatprep.subr.mxu0 0.0
    %135 = vmatpush1.msra.mxu0 0.0
    %136 = vmatprep.subr.mxu0 0.0
    %137 = vmatpush1.msra.mxu0 0.0
    %138 = vmatprep.subr.mxu0 0.0
    %139 = vmatpush1.msra.mxu0 0.0
    %140 = vmatprep.subr.mxu0 0.0
    %141 = vmatpush1.msra.mxu0 0.0
    %142 = vmatprep.subr.mxu0 0.0
    %143 = vmatpush1.msra.mxu0 0.0
    %144 = vmatprep.subr.mxu0 0.0
    %145 = vmatpush1.msra.mxu0 0.0
    %146 = vmatprep.subr.mxu0 0.0
    %147 = vmatpush1.msra.mxu0 %v89
    %148 = vmatprep.subr.mxu0 0.0
    %149 = vmatpush1.msra.mxu0 %v88
    %150 = vmatprep.subr.mxu0 0.0
    %151 = vmatpush1.msra.mxu0 %v87
    %152 = vmatprep.subr.mxu0 0.0
    %153 = vmatpush1.msra.mxu0 %v86
    %154 = vmatprep.subr.mxu0 0.0
    %155 = vmatpush2.msra.mxu0 0.0
    %156 = vmatprep.subr.mxu0 0.0
    %157 = vmatpush2.msra.mxu0 0.0
    %158 = vmatprep.subr.mxu0 0.0
    %159 = vmatpush2.msra.mxu0 0.0
    %160 = vmatprep.subr.mxu0 0.0
    %161 = vmatpush2.msra.mxu0 0.0
    %162 = vmatprep.subr.mxu0 0.0
    %163 = vmatpush2.msra.mxu0 0.0
    %164 = vmatprep.subr.mxu0 0.0
    %165 = vmatpush2.msra.mxu0 0.0
    %166 = vmatprep.subr.mxu0 0.0
    %167 = vmatpush2.msra.mxu0 0.0
    %168 = vmatprep.subr.mxu0 0.0
    %169 = vmatpush2.msra.mxu0 0.0
    %170 = vmatprep.subr.mxu0 0.0
    %171 = vmatpush2.msra.mxu0 0.0
    %172 = vmatprep.subr.mxu0 0.0
    %173 = vmatpush2.msra.mxu0 0.0
    %174 = vmatprep.subr.mxu0 0.0
    %175 = vmatpush2.msra.mxu0 0.0
    %176 = vmatprep.subr.mxu0 0.0
    %177 = vmatpush2.msra.mxu0 0.0
    %178 = vmatprep.subr.mxu0 0.0
    %179 = vmatpush2.msra.mxu0 0.0
    %180 = vmatprep.subr.mxu0 0.0
    %181 = vmatpush2.msra.mxu0 0.0
    %182 = vmatprep.subr.mxu0 0.0
    %183 = vmatpush2.msra.mxu0 0.0
    %184 = vmatprep.subr.mxu0 0.0
    %185 = vmatpush2.msra.mxu0 0.0
    %186 = vmatprep.mubr.f32.mxu0 0.0
    %187 = vmatmul.mubr.f32.gmra.mxu0 %v99
    %v188 = vpop.f32.mrf.mxu0
    %v189 = vadd.f32 %v95, %v188
    %v190 = vpop.f32.mrf.mxu0
    %191 = vmatprep.mubr.f32.mxu0 0.0
    %192 = vmatmul.mubr.f32.gmra.mxu0 %v102
    %v193 = vpop.f32.mrf.mxu0
    %v194 = vadd.f32 %v95, %v193
    %v195 = vpop.f32.mrf.mxu0
    %196 = vmatprep.mubr.f32.mxu0 0.0
    %197 = vmatmul.mubr.f32.gmra.mxu0 %v105
    %v198 = vpop.f32.mrf.mxu0
    %v199 = vadd.f32 %v95, %v198
    %v200 = vpop.f32.mrf.mxu0
    %201 = vmatprep.mubr.f32.mxu0 0.0
    %202 = vmatmul.mubr.f32.gmra.mxu0 %v108
    %v203 = vpop.f32.mrf.mxu0
    %v204 = vadd.f32 %v95, %v203
    %v205 = vpop.f32.mrf.mxu0
    %206 = vmatprep.mubr.f32.mxu0 0.0
    %207 = vmatmul.mubr.f32.gmra.mxu0 %v111
    %v208 = vpop.f32.mrf.mxu0
    %v209 = vadd.f32 %v95, %v208
    %v210 = vpop.f32.mrf.mxu0
    %211 = vmatprep.mubr.f32.mxu0 0.0
    %212 = vmatmul.mubr.f32.gmra.mxu0 %v114
    %v213 = vpop.f32.mrf.mxu0
    %v214 = vadd.f32 %v95, %v213
    %v215 = vpop.f32.mrf.mxu0
    %216 = vmatprep.mubr.f32.mxu0 0.0
    %217 = vmatmul.mubr.f32.gmra.mxu0 %v117
    %v218 = vpop.f32.mrf.mxu0
    %v219 = vadd.f32 %v95, %v218
    %v220 = vpop.f32.mrf.mxu0
    %221 = vmatprep.mubr.f32.mxu0 0.0
    %222 = vmatmul.mubr.f32.gmra.mxu0 %v120
    %v223 = vpop.f32.mrf.mxu0
    %v224 = vadd.f32 %v95, %v223
    %v225 = vpop.f32.mrf.mxu0
    %226 = vdwg.mxu0
    %v227 = vld [vmem:[#allocation8] sm:$0xff]
    %v228 = vld [vmem:[#allocation8 + $0x8] sm:$0xff]
    %v229 = vld [vmem:[#allocation8 + $0x10] sm:$0xff]
    %v230 = vld [vmem:[#allocation8 + $0x18] sm:$0xff]
    %v232 = vsel %vm97, 0.0, 0
    %234 = vmatprep.subr.mxu0 0.0
    %235 = vmatpush1.msra.mxu0 0.0
    %236 = vmatprep.subr.mxu0 0.0
    %237 = vmatpush1.msra.mxu0 0.0
    %238 = vmatprep.subr.mxu0 0.0
    %239 = vmatpush1.msra.mxu0 0.0
    %240 = vmatprep.subr.mxu0 0.0
    %241 = vmatpush1.msra.mxu0 0.0
    %242 = vmatprep.subr.mxu0 0.0
    %243 = vmatpush1.msra.mxu0 0.0
    %244 = vmatprep.subr.mxu0 0.0
    %245 = vmatpush1.msra.mxu0 0.0
    %246 = vmatprep.subr.mxu0 0.0
    %247 = vmatpush1.msra.mxu0 0.0
    %248 = vmatprep.subr.mxu0 0.0
    %249 = vmatpush1.msra.mxu0 0.0
    %250 = vmatprep.subr.mxu0 0.0
    %251 = vmatpush1.msra.mxu0 0.0
    %252 = vmatprep.subr.mxu0 0.0
    %253 = vmatpush1.msra.mxu0 0.0
    %254 = vmatprep.subr.mxu0 0.0
    %255 = vmatpush1.msra.mxu0 0.0
    %256 = vmatprep.subr.mxu0 0.0
    %257 = vmatpush1.msra.mxu0 0.0
    %258 = vmatprep.subr.mxu0 0.0
    %259 = vmatpush1.msra.mxu0 %v230
    %260 = vmatprep.subr.mxu0 0.0
    %261 = vmatpush1.msra.mxu0 %v229
    %262 = vmatprep.subr.mxu0 0.0
    %263 = vmatpush1.msra.mxu0 %v228
    %264 = vmatprep.subr.mxu0 0.0
    %265 = vmatpush1.msra.mxu0 %v227
    %266 = vmatprep.subr.mxu0 0.0
    %267 = vmatpush2.msra.mxu0 0.0
    %268 = vmatprep.subr.mxu0 0.0
    %269 = vmatpush2.msra.mxu0 0.0
    %270 = vmatprep.subr.mxu0 0.0
    %271 = vmatpush2.msra.mxu0 0.0
    %272 = vmatprep.subr.mxu0 0.0
    %273 = vmatpush2.msra.mxu0 0.0
    %274 = vmatprep.subr.mxu0 0.0
    %275 = vmatpush2.msra.mxu0 0.0
    %276 = vmatprep.subr.mxu0 0.0
    %277 = vmatpush2.msra.mxu0 0.0
    %278 = vmatprep.subr.mxu0 0.0
    %279 = vmatpush2.msra.mxu0 0.0
    %280 = vmatprep.subr.mxu0 0.0
    %281 = vmatpush2.msra.mxu0 0.0
    %282 = vmatprep.subr.mxu0 0.0
    %283 = vmatpush2.msra.mxu0 0.0
    %284 = vmatprep.subr.mxu0 0.0
    %285 = vmatpush2.msra.mxu0 0.0
    %286 = vmatprep.subr.mxu0 0.0
    %287 = vmatpush2.msra.mxu0 0.0
    %288 = vmatprep.subr.mxu0 0.0
    %289 = vmatpush2.msra.mxu0 0.0
    %290 = vmatprep.subr.mxu0 0.0
    %291 = vmatpush2.msra.mxu0 0.0
    %292 = vmatprep.subr.mxu0 0.0
    %293 = vmatpush2.msra.mxu0 0.0
    %294 = vmatprep.subr.mxu0 0.0
    %295 = vmatpush2.msra.mxu0 0.0
    %296 = vmatprep.subr.mxu0 0.0
    %297 = vmatpush2.msra.mxu0 0.0
    %298 = vmatprep.mubr.f32.mxu0 0.0
    %299 = vmatmul.mubr.f32.gmra.mxu0 %v232
    %v300 = vpop.f32.mrf.mxu0
    %v301 = vadd.f32 0.0, %v300
    %v302 = vpop.f32.mrf.mxu0
    %303 = vdwg.mxu0
    %v304 = vadd.f32 %v189, %v301
    %v305 = vxor.u32 %v304, 2147483648
    %v306 = vmul.f32 %v305, 1.442695
    %v307 = vpow.pop %v306
    %v308 = vadd.f32 %v307, 1.0
    %v309 = vrcp.pop %v308
    %v310 = vmul.f32 1.0, %v309
    %v311 = vtanh.pop %v304
    %v312 = vmul.f32 %v310, 0.0
    %314 = vrot.lane.b32.xlu0 %v311, 64
    %v315 = vpop.permute.xlu0 %314
    %v317 = vmul.f32 %v310, %v315
    %319 = vrot.lane.b32.xlu0 %v317, 32
    %v320 = vpop.permute.xlu0 %319
    %v322 = vadd.f32 %v312, %v320
    %v323 = vtanh.pop %v322
    %325 = vrot.lane.b32.xlu0 %v323, 64
    %v326 = vpop.permute.xlu0 %325
    %v328 = vmul.f32 %v310, %v326
    %v329 = vsel %vm70, 1, 0
    %330 = vset.pattern.permute.xlu0 0
    %331 = vperm.xlu0 %330, %v329
    %v332 = vpop.permute.xlu0 %331
    %vm333 = vcmp.eq.s32.totalorder %v332, 1
    %v334 = vsel %vm333, %v328, 0.0
    %v335 = vsel %vm333, %v322, 0.0
    %337 = vrot.lane.b32.xlu0 %v334, 32
    %v338 = vpop.permute.xlu0 %337
    %340 = vst.msk [vmem:[#allocation2] sm:$0xff] %vm97, %v338
    %v341 = vld [vmem:[#allocation8] sm:$0xff]
    %v342 = vld [vmem:[#allocation8 + $0x8] sm:$0xff]
    %v343 = vld [vmem:[#allocation8 + $0x10] sm:$0xff]
    %v344 = vld [vmem:[#allocation8 + $0x18] sm:$0xff]
    %v345 = vsel %vm97, %v338, 0
    %347 = vmatprep.subr.mxu0 0.0
    %348 = vmatpush1.msra.mxu0 0.0
    %349 = vmatprep.subr.mxu0 0.0
    %350 = vmatpush1.msra.mxu0 0.0
    %351 = vmatprep.subr.mxu0 0.0
    %352 = vmatpush1.msra.mxu0 0.0
    %353 = vmatprep.subr.mxu0 0.0
    %354 = vmatpush1.msra.mxu0 0.0
    %355 = vmatprep.subr.mxu0 0.0
    %356 = vmatpush1.msra.mxu0 0.0
    %357 = vmatprep.subr.mxu0 0.0
    %358 = vmatpush1.msra.mxu0 0.0
    %359 = vmatprep.subr.mxu0 0.0
    %360 = vmatpush1.msra.mxu0 0.0
    %361 = vmatprep.subr.mxu0 0.0
    %362 = vmatpush1.msra.mxu0 0.0
    %363 = vmatprep.subr.mxu0 0.0
    %364 = vmatpush1.msra.mxu0 0.0
    %365 = vmatprep.subr.mxu0 0.0
    %366 = vmatpush1.msra.mxu0 0.0
    %367 = vmatprep.subr.mxu0 0.0
    %368 = vmatpush1.msra.mxu0 0.0
    %369 = vmatprep.subr.mxu0 0.0
    %370 = vmatpush1.msra.mxu0 0.0
    %371 = vmatprep.subr.mxu0 0.0
    %372 = vmatpush1.msra.mxu0 %v344
    %373 = vmatprep.subr.mxu0 0.0
    %374 = vmatpush1.msra.mxu0 %v343
    %375 = vmatprep.subr.mxu0 0.0
    %376 = vmatpush1.msra.mxu0 %v342
    %377 = vmatprep.subr.mxu0 0.0
    %378 = vmatpush1.msra.mxu0 %v341
    %379 = vmatprep.subr.mxu0 0.0
    %380 = vmatpush2.msra.mxu0 0.0
    %381 = vmatprep.subr.mxu0 0.0
    %382 = vmatpush2.msra.mxu0 0.0
    %383 = vmatprep.subr.mxu0 0.0
    %384 = vmatpush2.msra.mxu0 0.0
    %385 = vmatprep.subr.mxu0 0.0
    %386 = vmatpush2.msra.mxu0 0.0
    %387 = vmatprep.subr.mxu0 0.0
    %388 = vmatpush2.msra.mxu0 0.0
    %389 = vmatprep.subr.mxu0 0.0
    %390 = vmatpush2.msra.mxu0 0.0
    %391 = vmatprep.subr.mxu0 0.0
    %392 = vmatpush2.msra.mxu0 0.0
    %393 = vmatprep.subr.mxu0 0.0
    %394 = vmatpush2.msra.mxu0 0.0
    %395 = vmatprep.subr.mxu0 0.0
    %396 = vmatpush2.msra.mxu0 0.0
    %397 = vmatprep.subr.mxu0 0.0
    %398 = vmatpush2.msra.mxu0 0.0
    %399 = vmatprep.subr.mxu0 0.0
    %400 = vmatpush2.msra.mxu0 0.0
    %401 = vmatprep.subr.mxu0 0.0
    %402 = vmatpush2.msra.mxu0 0.0
    %403 = vmatprep.subr.mxu0 0.0
    %404 = vmatpush2.msra.mxu0 0.0
    %405 = vmatprep.subr.mxu0 0.0
    %406 = vmatpush2.msra.mxu0 0.0
    %407 = vmatprep.subr.mxu0 0.0
    %408 = vmatpush2.msra.mxu0 0.0
    %409 = vmatprep.subr.mxu0 0.0
    %410 = vmatpush2.msra.mxu0 0.0
    %411 = vmatprep.mubr.f32.mxu0 0.0
    %412 = vmatmul.mubr.f32.gmra.mxu0 %v345
    %v413 = vpop.f32.mrf.mxu0
    %v414 = vadd.f32 0.0, %v413
    %v415 = vpop.f32.mrf.mxu0
    %416 = vdwg.mxu0
    %v417 = vadd.f32 %v194, %v414
    %v418 = vxor.u32 %v417, 2147483648
    %v419 = vmul.f32 %v418, 1.442695
    %v420 = vpow.pop %v419
    %v421 = vadd.f32 %v420, 1.0
    %v422 = vrcp.pop %v421
    %v423 = vmul.f32 1.0, %v422
    %v424 = vtanh.pop %v417
    %v425 = vmul.f32 %v423, %v335
    %427 = vrot.lane.b32.xlu0 %v424, 64
    %v428 = vpop.permute.xlu0 %427
    %v430 = vmul.f32 %v423, %v428
    %432 = vrot.lane.b32.xlu0 %v430, 32
    %v433 = vpop.permute.xlu0 %432
    %v435 = vadd.f32 %v425, %v433
    %v436 = vtanh.pop %v435
    %438 = vrot.lane.b32.xlu0 %v436, 64
    %v439 = vpop.permute.xlu0 %438
    %v441 = vmul.f32 %v423, %v439
    %v442 = vsel %vm71, 1, 0
    %443 = vset.pattern.permute.xlu0 0
    %444 = vperm.xlu0 %443, %v442
    %v445 = vpop.permute.xlu0 %444
    %vm446 = vcmp.eq.s32.totalorder %v445, 1
    %v447 = vsel %vm446, %v441, %v334
    %v448 = vsel %vm446, %v435, %v335
    %450 = vrot.lane.b32.xlu0 %v447, 32
    %v451 = vpop.permute.xlu0 %450
    %s453 = scalar_lea.vmem [#allocation2], 8
    %454 = vst.msk [vmem:[%s453] sm:$0xff] %vm97, %v451
    %v455 = vld [vmem:[#allocation8] sm:$0xff]
    %v456 = vld [vmem:[#allocation8 + $0x8] sm:$0xff]
    %v457 = vld [vmem:[#allocation8 + $0x10] sm:$0xff]
    %v458 = vld [vmem:[#allocation8 + $0x18] sm:$0xff]
    %v459 = vsel %vm97, %v451, 0
    %461 = vmatprep.subr.mxu0 0.0
    %462 = vmatpush1.msra.mxu0 0.0
    %463 = vmatprep.subr.mxu0 0.0
    %464 = vmatpush1.msra.mxu0 0.0
    %465 = vmatprep.subr.mxu0 0.0
    %466 = vmatpush1.msra.mxu0 0.0
    %467 = vmatprep.subr.mxu0 0.0
    %468 = vmatpush1.msra.mxu0 0.0
    %469 = vmatprep.subr.mxu0 0.0
    %470 = vmatpush1.msra.mxu0 0.0
    %471 = vmatprep.subr.mxu0 0.0
    %472 = vmatpush1.msra.mxu0 0.0
    %473 = vmatprep.subr.mxu0 0.0
    %474 = vmatpush1.msra.mxu0 0.0
    %475 = vmatprep.subr.mxu0 0.0
    %476 = vmatpush1.msra.mxu0 0.0
    %477 = vmatprep.subr.mxu0 0.0
    %478 = vmatpush1.msra.mxu0 0.0
    %479 = vmatprep.subr.mxu0 0.0
    %480 = vmatpush1.msra.mxu0 0.0
    %481 = vmatprep.subr.mxu0 0.0
    %482 = vmatpush1.msra.mxu0 0.0
    %483 = vmatprep.subr.mxu0 0.0
    %484 = vmatpush1.msra.mxu0 0.0
    %485 = vmatprep.subr.mxu0 0.0
    %486 = vmatpush1.msra.mxu0 %v458
    %487 = vmatprep.subr.mxu0 0.0
    %488 = vmatpush1.msra.mxu0 %v457
    %489 = vmatprep.subr.mxu0 0.0
    %490 = vmatpush1.msra.mxu0 %v456
    %491 = vmatprep.subr.mxu0 0.0
    %492 = vmatpush1.msra.mxu0 %v455
    %493 = vmatprep.subr.mxu0 0.0
    %494 = vmatpush2.msra.mxu0 0.0
    %495 = vmatprep.subr.mxu0 0.0
    %496 = vmatpush2.msra.mxu0 0.0
    %497 = vmatprep.subr.mxu0 0.0
    %498 = vmatpush2.msra.mxu0 0.0
    %499 = vmatprep.subr.mxu0 0.0
    %500 = vmatpush2.msra.mxu0 0.0
    %501 = vmatprep.subr.mxu0 0.0
    %502 = vmatpush2.msra.mxu0 0.0
    %503 = vmatprep.subr.mxu0 0.0
    %504 = vmatpush2.msra.mxu0 0.0
    %505 = vmatprep.subr.mxu0 0.0
    %506 = vmatpush2.msra.mxu0 0.0
    %507 = vmatprep.subr.mxu0 0.0
    %508 = vmatpush2.msra.mxu0 0.0
    %509 = vmatprep.subr.mxu0 0.0
    %510 = vmatpush2.msra.mxu0 0.0
    %511 = vmatprep.subr.mxu0 0.0
    %512 = vmatpush2.msra.mxu0 0.0
    %513 = vmatprep.subr.mxu0 0.0
    %514 = vmatpush2.msra.mxu0 0.0
    %515 = vmatprep.subr.mxu0 0.0
    %516 = vmatpush2.msra.mxu0 0.0
    %517 = vmatprep.subr.mxu0 0.0
    %518 = vmatpush2.msra.mxu0 0.0
    %519 = vmatprep.subr.mxu0 0.0
    %520 = vmatpush2.msra.mxu0 0.0
    %521 = vmatprep.subr.mxu0 0.0
    %522 = vmatpush2.msra.mxu0 0.0
    %523 = vmatprep.subr.mxu0 0.0
    %524 = vmatpush2.msra.mxu0 0.0
    %525 = vmatprep.mubr.f32.mxu0 0.0
    %526 = vmatmul.mubr.f32.gmra.mxu0 %v459
    %v527 = vpop.f32.mrf.mxu0
    %v528 = vadd.f32 0.0, %v527
    %v529 = vpop.f32.mrf.mxu0
    %530 = vdwg.mxu0
    %v531 = vadd.f32 %v199, %v528
    %v532 = vxor.u32 %v531, 2147483648
    %v533 = vmul.f32 %v532, 1.442695
    %v534 = vpow.pop %v533
    %v535 = vadd.f32 %v534, 1.0
    %v536 = vrcp.pop %v535
    %v537 = vmul.f32 1.0, %v536
    %v538 = vtanh.pop %v531
    %v539 = vmul.f32 %v537, %v448
    %541 = vrot.lane.b32.xlu0 %v538, 64
    %v542 = vpop.permute.xlu0 %541
    %v544 = vmul.f32 %v537, %v542
    %546 = vrot.lane.b32.xlu0 %v544, 32
    %v547 = vpop.permute.xlu0 %546
    %v549 = vadd.f32 %v539, %v547
    %v550 = vtanh.pop %v549
    %552 = vrot.lane.b32.xlu0 %v550, 64
    %v553 = vpop.permute.xlu0 %552
    %v555 = vmul.f32 %v537, %v553
    %v556 = vsel %vm72, 1, 0
    %557 = vset.pattern.permute.xlu0 0
    %558 = vperm.xlu0 %557, %v556
    %v559 = vpop.permute.xlu0 %558
    %vm560 = vcmp.eq.s32.totalorder %v559, 1
    %v561 = vsel %vm560, %v555, %v447
    %v562 = vsel %vm560, %v549, %v448
    %564 = vrot.lane.b32.xlu0 %v561, 32
    %v565 = vpop.permute.xlu0 %564
    %s567 = scalar_lea.vmem [#allocation2], 16
    %568 = vst.msk [vmem:[%s567] sm:$0xff] %vm97, %v565
    %v569 = vld [vmem:[#allocation8] sm:$0xff]
    %v570 = vld [vmem:[#allocation8 + $0x8] sm:$0xff]
    %v571 = vld [vmem:[#allocation8 + $0x10] sm:$0xff]
    %v572 = vld [vmem:[#allocation8 + $0x18] sm:$0xff]
    %v573 = vsel %vm97, %v565, 0
    %575 = vmatprep.subr.mxu0 0.0
    %576 = vmatpush1.msra.mxu0 0.0
    %577 = vmatprep.subr.mxu0 0.0
    %578 = vmatpush1.msra.mxu0 0.0
    %579 = vmatprep.subr.mxu0 0.0
    %580 = vmatpush1.msra.mxu0 0.0
    %581 = vmatprep.subr.mxu0 0.0
    %582 = vmatpush1.msra.mxu0 0.0
    %583 = vmatprep.subr.mxu0 0.0
    %584 = vmatpush1.msra.mxu0 0.0
    %585 = vmatprep.subr.mxu0 0.0
    %586 = vmatpush1.msra.mxu0 0.0
    %587 = vmatprep.subr.mxu0 0.0
    %588 = vmatpush1.msra.mxu0 0.0
    %589 = vmatprep.subr.mxu0 0.0
    %590 = vmatpush1.msra.mxu0 0.0
    %591 = vmatprep.subr.mxu0 0.0
    %592 = vmatpush1.msra.mxu0 0.0
    %593 = vmatprep.subr.mxu0 0.0
    %594 = vmatpush1.msra.mxu0 0.0
    %595 = vmatprep.subr.mxu0 0.0
    %596 = vmatpush1.msra.mxu0 0.0
    %597 = vmatprep.subr.mxu0 0.0
    %598 = vmatpush1.msra.mxu0 0.0
    %599 = vmatprep.subr.mxu0 0.0
    %600 = vmatpush1.msra.mxu0 %v572
    %601 = vmatprep.subr.mxu0 0.0
    %602 = vmatpush1.msra.mxu0 %v571
    %603 = vmatprep.subr.mxu0 0.0
    %604 = vmatpush1.msra.mxu0 %v570
    %605 = vmatprep.subr.mxu0 0.0
    %606 = vmatpush1.msra.mxu0 %v569
    %607 = vmatprep.subr.mxu0 0.0
    %608 = vmatpush2.msra.mxu0 0.0
    %609 = vmatprep.subr.mxu0 0.0
    %610 = vmatpush2.msra.mxu0 0.0
    %611 = vmatprep.subr.mxu0 0.0
    %612 = vmatpush2.msra.mxu0 0.0
    %613 = vmatprep.subr.mxu0 0.0
    %614 = vmatpush2.msra.mxu0 0.0
    %615 = vmatprep.subr.mxu0 0.0
    %616 = vmatpush2.msra.mxu0 0.0
    %617 = vmatprep.subr.mxu0 0.0
    %618 = vmatpush2.msra.mxu0 0.0
    %619 = vmatprep.subr.mxu0 0.0
    %620 = vmatpush2.msra.mxu0 0.0
    %621 = vmatprep.subr.mxu0 0.0
    %622 = vmatpush2.msra.mxu0 0.0
    %623 = vmatprep.subr.mxu0 0.0
    %624 = vmatpush2.msra.mxu0 0.0
    %625 = vmatprep.subr.mxu0 0.0
    %626 = vmatpush2.msra.mxu0 0.0
    %627 = vmatprep.subr.mxu0 0.0
    %628 = vmatpush2.msra.mxu0 0.0
    %629 = vmatprep.subr.mxu0 0.0
    %630 = vmatpush2.msra.mxu0 0.0
    %631 = vmatprep.subr.mxu0 0.0
    %632 = vmatpush2.msra.mxu0 0.0
    %633 = vmatprep.subr.mxu0 0.0
    %634 = vmatpush2.msra.mxu0 0.0
    %635 = vmatprep.subr.mxu0 0.0
    %636 = vmatpush2.msra.mxu0 0.0
    %637 = vmatprep.subr.mxu0 0.0
    %638 = vmatpush2.msra.mxu0 0.0
    %639 = vmatprep.mubr.f32.mxu0 0.0
    %640 = vmatmul.mubr.f32.gmra.mxu0 %v573
    %v641 = vpop.f32.mrf.mxu0
    %v642 = vadd.f32 0.0, %v641
    %v643 = vpop.f32.mrf.mxu0
    %644 = vdwg.mxu0
    %v645 = vadd.f32 %v204, %v642
    %v646 = vxor.u32 %v645, 2147483648
    %v647 = vmul.f32 %v646, 1.442695
    %v648 = vpow.pop %v647
    %v649 = vadd.f32 %v648, 1.0
    %v650 = vrcp.pop %v649
    %v651 = vmul.f32 1.0, %v650
    %v652 = vtanh.pop %v645
    %v653 = vmul.f32 %v651, %v562
    %655 = vrot.lane.b32.xlu0 %v652, 64
    %v656 = vpop.permute.xlu0 %655
    %v658 = vmul.f32 %v651, %v656
    %660 = vrot.lane.b32.xlu0 %v658, 32
    %v661 = vpop.permute.xlu0 %660
    %v663 = vadd.f32 %v653, %v661
    %v664 = vtanh.pop %v663
    %666 = vrot.lane.b32.xlu0 %v664, 64
    %v667 = vpop.permute.xlu0 %666
    %v669 = vmul.f32 %v651, %v667
    %v670 = vsel %vm73, 1, 0
    %671 = vset.pattern.permute.xlu0 0
    %672 = vperm.xlu0 %671, %v670
    %v673 = vpop.permute.xlu0 %672
    %vm674 = vcmp.eq.s32.totalorder %v673, 1
    %v675 = vsel %vm674, %v669, %v561
    %v676 = vsel %vm674, %v663, %v562
    %678 = vrot.lane.b32.xlu0 %v675, 32
    %v679 = vpop.permute.xlu0 %678
    %s681 = scalar_lea.vmem [#allocation2], 24
    %682 = vst.msk [vmem:[%s681] sm:$0xff] %vm97, %v679
    %v683 = vld [vmem:[#allocation8] sm:$0xff]
    %v684 = vld [vmem:[#allocation8 + $0x8] sm:$0xff]
    %v685 = vld [vmem:[#allocation8 + $0x10] sm:$0xff]
    %v686 = vld [vmem:[#allocation8 + $0x18] sm:$0xff]
    %v687 = vsel %vm97, %v679, 0
    %689 = vmatprep.subr.mxu0 0.0
    %690 = vmatpush1.msra.mxu0 0.0
    %691 = vmatprep.subr.mxu0 0.0
    %692 = vmatpush1.msra.mxu0 0.0
    %693 = vmatprep.subr.mxu0 0.0
    %694 = vmatpush1.msra.mxu0 0.0
    %695 = vmatprep.subr.mxu0 0.0
    %696 = vmatpush1.msra.mxu0 0.0
    %697 = vmatprep.subr.mxu0 0.0
    %698 = vmatpush1.msra.mxu0 0.0
    %699 = vmatprep.subr.mxu0 0.0
    %700 = vmatpush1.msra.mxu0 0.0
    %701 = vmatprep.subr.mxu0 0.0
    %702 = vmatpush1.msra.mxu0 0.0
    %703 = vmatprep.subr.mxu0 0.0
    %704 = vmatpush1.msra.mxu0 0.0
    %705 = vmatprep.subr.mxu0 0.0
    %706 = vmatpush1.msra.mxu0 0.0
    %707 = vmatprep.subr.mxu0 0.0
    %708 = vmatpush1.msra.mxu0 0.0
    %709 = vmatprep.subr.mxu0 0.0
    %710 = vmatpush1.msra.mxu0 0.0
    %711 = vmatprep.subr.mxu0 0.0
    %712 = vmatpush1.msra.mxu0 0.0
    %713 = vmatprep.subr.mxu0 0.0
    %714 = vmatpush1.msra.mxu0 %v686
    %715 = vmatprep.subr.mxu0 0.0
    %716 = vmatpush1.msra.mxu0 %v685
    %717 = vmatprep.subr.mxu0 0.0
    %718 = vmatpush1.msra.mxu0 %v684
    %719 = vmatprep.subr.mxu0 0.0
    %720 = vmatpush1.msra.mxu0 %v683
    %721 = vmatprep.subr.mxu0 0.0
    %722 = vmatpush2.msra.mxu0 0.0
    %723 = vmatprep.subr.mxu0 0.0
    %724 = vmatpush2.msra.mxu0 0.0
    %725 = vmatprep.subr.mxu0 0.0
    %726 = vmatpush2.msra.mxu0 0.0
    %727 = vmatprep.subr.mxu0 0.0
    %728 = vmatpush2.msra.mxu0 0.0
    %729 = vmatprep.subr.mxu0 0.0
    %730 = vmatpush2.msra.mxu0 0.0
    %731 = vmatprep.subr.mxu0 0.0
    %732 = vmatpush2.msra.mxu0 0.0
    %733 = vmatprep.subr.mxu0 0.0
    %734 = vmatpush2.msra.mxu0 0.0
    %735 = vmatprep.subr.mxu0 0.0
    %736 = vmatpush2.msra.mxu0 0.0
    %737 = vmatprep.subr.mxu0 0.0
    %738 = vmatpush2.msra.mxu0 0.0
    %739 = vmatprep.subr.mxu0 0.0
    %740 = vmatpush2.msra.mxu0 0.0
    %741 = vmatprep.subr.mxu0 0.0
    %742 = vmatpush2.msra.mxu0 0.0
    %743 = vmatprep.subr.mxu0 0.0
    %744 = vmatpush2.msra.mxu0 0.0
    %745 = vmatprep.subr.mxu0 0.0
    %746 = vmatpush2.msra.mxu0 0.0
    %747 = vmatprep.subr.mxu0 0.0
    %748 = vmatpush2.msra.mxu0 0.0
    %749 = vmatprep.subr.mxu0 0.0
    %750 = vmatpush2.msra.mxu0 0.0
    %751 = vmatprep.subr.mxu0 0.0
    %752 = vmatpush2.msra.mxu0 0.0
    %753 = vmatprep.mubr.f32.mxu0 0.0
    %754 = vmatmul.mubr.f32.gmra.mxu0 %v687
    %v755 = vpop.f32.mrf.mxu0
    %v756 = vadd.f32 0.0, %v755
    %v757 = vpop.f32.mrf.mxu0
    %758 = vdwg.mxu0
    %v759 = vadd.f32 %v209, %v756
    %v760 = vxor.u32 %v759, 2147483648
    %v761 = vmul.f32 %v760, 1.442695
    %v762 = vpow.pop %v761
    %v763 = vadd.f32 %v762, 1.0
    %v764 = vrcp.pop %v763
    %v765 = vmul.f32 1.0, %v764
    %v766 = vtanh.pop %v759
    %v767 = vmul.f32 %v765, %v676
    %769 = vrot.lane.b32.xlu0 %v766, 64
    %v770 = vpop.permute.xlu0 %769
    %v772 = vmul.f32 %v765, %v770
    %774 = vrot.lane.b32.xlu0 %v772, 32
    %v775 = vpop.permute.xlu0 %774
    %v777 = vadd.f32 %v767, %v775
    %v778 = vtanh.pop %v777
    %780 = vrot.lane.b32.xlu0 %v778, 64
    %v781 = vpop.permute.xlu0 %780
    %v783 = vmul.f32 %v765, %v781
    %v784 = vsel %vm74, 1, 0
    %785 = vset.pattern.permute.xlu0 0
    %786 = vperm.xlu0 %785, %v784
    %v787 = vpop.permute.xlu0 %786
    %vm788 = vcmp.eq.s32.totalorder %v787, 1
    %v789 = vsel %vm788, %v783, %v675
    %v790 = vsel %vm788, %v777, %v676
    %792 = vrot.lane.b32.xlu0 %v789, 32
    %v793 = vpop.permute.xlu0 %792
    %s795 = scalar_lea.vmem [#allocation2], 32
    %796 = vst.msk [vmem:[%s795] sm:$0xff] %vm97, %v793
    %v797 = vld [vmem:[#allocation8] sm:$0xff]
    %v798 = vld [vmem:[#allocation8 + $0x8] sm:$0xff]
    %v799 = vld [vmem:[#allocation8 + $0x10] sm:$0xff]
    %v800 = vld [vmem:[#allocation8 + $0x18] sm:$0xff]
    %v801 = vsel %vm97, %v793, 0
    %803 = vmatprep.subr.mxu0 0.0
    %804 = vmatpush1.msra.mxu0 0.0
    %805 = vmatprep.subr.mxu0 0.0
    %806 = vmatpush1.msra.mxu0 0.0
    %807 = vmatprep.subr.mxu0 0.0
    %808 = vmatpush1.msra.mxu0 0.0
    %809 = vmatprep.subr.mxu0 0.0
    %810 = vmatpush1.msra.mxu0 0.0
    %811 = vmatprep.subr.mxu0 0.0
    %812 = vmatpush1.msra.mxu0 0.0
    %813 = vmatprep.subr.mxu0 0.0
    %814 = vmatpush1.msra.mxu0 0.0
    %815 = vmatprep.subr.mxu0 0.0
    %816 = vmatpush1.msra.mxu0 0.0
    %817 = vmatprep.subr.mxu0 0.0
    %818 = vmatpush1.msra.mxu0 0.0
    %819 = vmatprep.subr.mxu0 0.0
    %820 = vmatpush1.msra.mxu0 0.0
    %821 = vmatprep.subr.mxu0 0.0
    %822 = vmatpush1.msra.mxu0 0.0
    %823 = vmatprep.subr.mxu0 0.0
    %824 = vmatpush1.msra.mxu0 0.0
    %825 = vmatprep.subr.mxu0 0.0
    %826 = vmatpush1.msra.mxu0 0.0
    %827 = vmatprep.subr.mxu0 0.0
    %828 = vmatpush1.msra.mxu0 %v800
    %829 = vmatprep.subr.mxu0 0.0
    %830 = vmatpush1.msra.mxu0 %v799
    %831 = vmatprep.subr.mxu0 0.0
    %832 = vmatpush1.msra.mxu0 %v798
    %833 = vmatprep.subr.mxu0 0.0
    %834 = vmatpush1.msra.mxu0 %v797
    %835 = vmatprep.subr.mxu0 0.0
    %836 = vmatpush2.msra.mxu0 0.0
    %837 = vmatprep.subr.mxu0 0.0
    %838 = vmatpush2.msra.mxu0 0.0
    %839 = vmatprep.subr.mxu0 0.0
    %840 = vmatpush2.msra.mxu0 0.0
    %841 = vmatprep.subr.mxu0 0.0
    %842 = vmatpush2.msra.mxu0 0.0
    %843 = vmatprep.subr.mxu0 0.0
    %844 = vmatpush2.msra.mxu0 0.0
    %845 = vmatprep.subr.mxu0 0.0
    %846 = vmatpush2.msra.mxu0 0.0
    %847 = vmatprep.subr.mxu0 0.0
    %848 = vmatpush2.msra.mxu0 0.0
    %849 = vmatprep.subr.mxu0 0.0
    %850 = vmatpush2.msra.mxu0 0.0
    %851 = vmatprep.subr.mxu0 0.0
    %852 = vmatpush2.msra.mxu0 0.0
    %853 = vmatprep.subr.mxu0 0.0
    %854 = vmatpush2.msra.mxu0 0.0
    %855 = vmatprep.subr.mxu0 0.0
    %856 = vmatpush2.msra.mxu0 0.0
    %857 = vmatprep.subr.mxu0 0.0
    %858 = vmatpush2.msra.mxu0 0.0
    %859 = vmatprep.subr.mxu0 0.0
    %860 = vmatpush2.msra.mxu0 0.0
    %861 = vmatprep.subr.mxu0 0.0
    %862 = vmatpush2.msra.mxu0 0.0
    %863 = vmatprep.subr.mxu0 0.0
    %864 = vmatpush2.msra.mxu0 0.0
    %865 = vmatprep.subr.mxu0 0.0
    %866 = vmatpush2.msra.mxu0 0.0
    %867 = vmatprep.mubr.f32.mxu0 0.0
    %868 = vmatmul.mubr.f32.gmra.mxu0 %v801
    %v869 = vpop.f32.mrf.mxu0
    %v870 = vadd.f32 0.0, %v869
    %v871 = vpop.f32.mrf.mxu0
    %872 = vdwg.mxu0
    %v873 = vadd.f32 %v214, %v870
    %v874 = vxor.u32 %v873, 2147483648
    %v875 = vmul.f32 %v874, 1.442695
    %v876 = vpow.pop %v875
    %v877 = vadd.f32 %v876, 1.0
    %v878 = vrcp.pop %v877
    %v879 = vmul.f32 1.0, %v878
    %v880 = vtanh.pop %v873
    %v881 = vmul.f32 %v879, %v790
    %883 = vrot.lane.b32.xlu0 %v880, 64
    %v884 = vpop.permute.xlu0 %883
    %v886 = vmul.f32 %v879, %v884
    %888 = vrot.lane.b32.xlu0 %v886, 32
    %v889 = vpop.permute.xlu0 %888
    %v891 = vadd.f32 %v881, %v889
    %v892 = vtanh.pop %v891
    %894 = vrot.lane.b32.xlu0 %v892, 64
    %v895 = vpop.permute.xlu0 %894
    %v897 = vmul.f32 %v879, %v895
    %v898 = vsel %vm75, 1, 0
    %899 = vset.pattern.permute.xlu0 0
    %900 = vperm.xlu0 %899, %v898
    %v901 = vpop.permute.xlu0 %900
    %vm902 = vcmp.eq.s32.totalorder %v901, 1
    %v903 = vsel %vm902, %v897, %v789
    %v904 = vsel %vm902, %v891, %v790
    %906 = vrot.lane.b32.xlu0 %v903, 32
    %v907 = vpop.permute.xlu0 %906
    %s909 = scalar_lea.vmem [#allocation2], 40
    %910 = vst.msk [vmem:[%s909] sm:$0xff] %vm97, %v907
    %v911 = vld [vmem:[#allocation8] sm:$0xff]
    %v912 = vld [vmem:[#allocation8 + $0x8] sm:$0xff]
    %v913 = vld [vmem:[#allocation8 + $0x10] sm:$0xff]
    %v914 = vld [vmem:[#allocation8 + $0x18] sm:$0xff]
    %v915 = vsel %vm97, %v907, 0
    %917 = vmatprep.subr.mxu0 0.0
    %918 = vmatpush1.msra.mxu0 0.0
    %919 = vmatprep.subr.mxu0 0.0
    %920 = vmatpush1.msra.mxu0 0.0
    %921 = vmatprep.subr.mxu0 0.0
    %922 = vmatpush1.msra.mxu0 0.0
    %923 = vmatprep.subr.mxu0 0.0
    %924 = vmatpush1.msra.mxu0 0.0
    %925 = vmatprep.subr.mxu0 0.0
    %926 = vmatpush1.msra.mxu0 0.0
    %927 = vmatprep.subr.mxu0 0.0
    %928 = vmatpush1.msra.mxu0 0.0
    %929 = vmatprep.subr.mxu0 0.0
    %930 = vmatpush1.msra.mxu0 0.0
    %931 = vmatprep.subr.mxu0 0.0
    %932 = vmatpush1.msra.mxu0 0.0
    %933 = vmatprep.subr.mxu0 0.0
    %934 = vmatpush1.msra.mxu0 0.0
    %935 = vmatprep.subr.mxu0 0.0
    %936 = vmatpush1.msra.mxu0 0.0
    %937 = vmatprep.subr.mxu0 0.0
    %938 = vmatpush1.msra.mxu0 0.0
    %939 = vmatprep.subr.mxu0 0.0
    %940 = vmatpush1.msra.mxu0 0.0
    %941 = vmatprep.subr.mxu0 0.0
    %942 = vmatpush1.msra.mxu0 %v914
    %943 = vmatprep.subr.mxu0 0.0
    %944 = vmatpush1.msra.mxu0 %v913
    %945 = vmatprep.subr.mxu0 0.0
    %946 = vmatpush1.msra.mxu0 %v912
    %947 = vmatprep.subr.mxu0 0.0
    %948 = vmatpush1.msra.mxu0 %v911
    %949 = vmatprep.subr.mxu0 0.0
    %950 = vmatpush2.msra.mxu0 0.0
    %951 = vmatprep.subr.mxu0 0.0
    %952 = vmatpush2.msra.mxu0 0.0
    %953 = vmatprep.subr.mxu0 0.0
    %954 = vmatpush2.msra.mxu0 0.0
    %955 = vmatprep.subr.mxu0 0.0
    %956 = vmatpush2.msra.mxu0 0.0
    %957 = vmatprep.subr.mxu0 0.0
    %958 = vmatpush2.msra.mxu0 0.0
    %959 = vmatprep.subr.mxu0 0.0
    %960 = vmatpush2.msra.mxu0 0.0
    %961 = vmatprep.subr.mxu0 0.0
    %962 = vmatpush2.msra.mxu0 0.0
    %963 = vmatprep.subr.mxu0 0.0
    %964 = vmatpush2.msra.mxu0 0.0
    %965 = vmatprep.subr.mxu0 0.0
    %966 = vmatpush2.msra.mxu0 0.0
    %967 = vmatprep.subr.mxu0 0.0
    %968 = vmatpush2.msra.mxu0 0.0
    %969 = vmatprep.subr.mxu0 0.0
    %970 = vmatpush2.msra.mxu0 0.0
    %971 = vmatprep.subr.mxu0 0.0
    %972 = vmatpush2.msra.mxu0 0.0
    %973 = vmatprep.subr.mxu0 0.0
    %974 = vmatpush2.msra.mxu0 0.0
    %975 = vmatprep.subr.mxu0 0.0
    %976 = vmatpush2.msra.mxu0 0.0
    %977 = vmatprep.subr.mxu0 0.0
    %978 = vmatpush2.msra.mxu0 0.0
    %979 = vmatprep.subr.mxu0 0.0
    %980 = vmatpush2.msra.mxu0 0.0
    %981 = vmatprep.mubr.f32.mxu0 0.0
    %982 = vmatmul.mubr.f32.gmra.mxu0 %v915
    %v983 = vpop.f32.mrf.mxu0
    %v984 = vadd.f32 0.0, %v983
    %v985 = vpop.f32.mrf.mxu0
    %986 = vdwg.mxu0
    %v987 = vadd.f32 %v219, %v984
    %v988 = vxor.u32 %v987, 2147483648
    %v989 = vmul.f32 %v988, 1.442695
    %v990 = vpow.pop %v989
    %v991 = vadd.f32 %v990, 1.0
    %v992 = vrcp.pop %v991
    %v993 = vmul.f32 1.0, %v992
    %v994 = vtanh.pop %v987
    %v995 = vmul.f32 %v993, %v904
    %997 = vrot.lane.b32.xlu0 %v994, 64
    %v998 = vpop.permute.xlu0 %997
    %v1000 = vmul.f32 %v993, %v998
    %1002 = vrot.lane.b32.xlu0 %v1000, 32
    %v1003 = vpop.permute.xlu0 %1002
    %v1005 = vadd.f32 %v995, %v1003
    %v1006 = vtanh.pop %v1005
    %1008 = vrot.lane.b32.xlu0 %v1006, 64
    %v1009 = vpop.permute.xlu0 %1008
    %v1011 = vmul.f32 %v993, %v1009
    %v1012 = vsel %vm76, 1, 0
    %1013 = vset.pattern.permute.xlu0 0
    %1014 = vperm.xlu0 %1013, %v1012
    %v1015 = vpop.permute.xlu0 %1014
    %vm1016 = vcmp.eq.s32.totalorder %v1015, 1
    %v1017 = vsel %vm1016, %v1011, %v903
    %v1018 = vsel %vm1016, %v1005, %v904
    %1020 = vrot.lane.b32.xlu0 %v1017, 32
    %v1021 = vpop.permute.xlu0 %1020
    %s1023 = scalar_lea.vmem [#allocation2], 48
    %1024 = vst.msk [vmem:[%s1023] sm:$0xff] %vm97, %v1021
    %v1025 = vld [vmem:[#allocation8] sm:$0xff]
    %v1026 = vld [vmem:[#allocation8 + $0x8] sm:$0xff]
    %v1027 = vld [vmem:[#allocation8 + $0x10] sm:$0xff]
    %v1028 = vld [vmem:[#allocation8 + $0x18] sm:$0xff]
    %v1029 = vsel %vm97, %v1021, 0
    %1031 = vmatprep.subr.mxu0 0.0
    %1032 = vmatpush1.msra.mxu0 0.0
    %1033 = vmatprep.subr.mxu0 0.0
    %1034 = vmatpush1.msra.mxu0 0.0
    %1035 = vmatprep.subr.mxu0 0.0
    %1036 = vmatpush1.msra.mxu0 0.0
    %1037 = vmatprep.subr.mxu0 0.0
    %1038 = vmatpush1.msra.mxu0 0.0
    %1039 = vmatprep.subr.mxu0 0.0
    %1040 = vmatpush1.msra.mxu0 0.0
    %1041 = vmatprep.subr.mxu0 0.0
    %1042 = vmatpush1.msra.mxu0 0.0
    %1043 = vmatprep.subr.mxu0 0.0
    %1044 = vmatpush1.msra.mxu0 0.0
    %1045 = vmatprep.subr.mxu0 0.0
    %1046 = vmatpush1.msra.mxu0 0.0
    %1047 = vmatprep.subr.mxu0 0.0
    %1048 = vmatpush1.msra.mxu0 0.0
    %1049 = vmatprep.subr.mxu0 0.0
    %1050 = vmatpush1.msra.mxu0 0.0
    %1051 = vmatprep.subr.mxu0 0.0
    %1052 = vmatpush1.msra.mxu0 0.0
    %1053 = vmatprep.subr.mxu0 0.0
    %1054 = vmatpush1.msra.mxu0 0.0
    %1055 = vmatprep.subr.mxu0 0.0
    %1056 = vmatpush1.msra.mxu0 %v1028
    %1057 = vmatprep.subr.mxu0 0.0
    %1058 = vmatpush1.msra.mxu0 %v1027
    %1059 = vmatprep.subr.mxu0 0.0
    %1060 = vmatpush1.msra.mxu0 %v1026
    %1061 = vmatprep.subr.mxu0 0.0
    %1062 = vmatpush1.msra.mxu0 %v1025
    %1063 = vmatprep.subr.mxu0 0.0
    %1064 = vmatpush2.msra.mxu0 0.0
    %1065 = vmatprep.subr.mxu0 0.0
    %1066 = vmatpush2.msra.mxu0 0.0
    %1067 = vmatprep.subr.mxu0 0.0
    %1068 = vmatpush2.msra.mxu0 0.0
    %1069 = vmatprep.subr.mxu0 0.0
    %1070 = vmatpush2.msra.mxu0 0.0
    %1071 = vmatprep.subr.mxu0 0.0
    %1072 = vmatpush2.msra.mxu0 0.0
    %1073 = vmatprep.subr.mxu0 0.0
    %1074 = vmatpush2.msra.mxu0 0.0
    %1075 = vmatprep.subr.mxu0 0.0
    %1076 = vmatpush2.msra.mxu0 0.0
    %1077 = vmatprep.subr.mxu0 0.0
    %1078 = vmatpush2.msra.mxu0 0.0
    %1079 = vmatprep.subr.mxu0 0.0
    %1080 = vmatpush2.msra.mxu0 0.0
    %1081 = vmatprep.subr.mxu0 0.0
    %1082 = vmatpush2.msra.mxu0 0.0
    %1083 = vmatprep.subr.mxu0 0.0
    %1084 = vmatpush2.msra.mxu0 0.0
    %1085 = vmatprep.subr.mxu0 0.0
    %1086 = vmatpush2.msra.mxu0 0.0
    %1087 = vmatprep.subr.mxu0 0.0
    %1088 = vmatpush2.msra.mxu0 0.0
    %1089 = vmatprep.subr.mxu0 0.0
    %1090 = vmatpush2.msra.mxu0 0.0
    %1091 = vmatprep.subr.mxu0 0.0
    %1092 = vmatpush2.msra.mxu0 0.0
    %1093 = vmatprep.subr.mxu0 0.0
    %1094 = vmatpush2.msra.mxu0 0.0
    %1095 = vmatprep.mubr.f32.mxu0 0.0
    %1096 = vmatmul.mubr.f32.gmra.mxu0 %v1029
    %v1097 = vpop.f32.mrf.mxu0
    %v1098 = vadd.f32 0.0, %v1097
    %v1099 = vpop.f32.mrf.mxu0
    %1100 = vdwg.mxu0
    %v1101 = vadd.f32 %v224, %v1098
    %v1102 = vxor.u32 %v1101, 2147483648
    %v1103 = vmul.f32 %v1102, 1.442695
    %v1104 = vpow.pop %v1103
    %v1105 = vadd.f32 %v1104, 1.0
    %v1106 = vrcp.pop %v1105
    %v1107 = vmul.f32 1.0, %v1106
    %v1108 = vtanh.pop %v1101
    %v1109 = vmul.f32 %v1107, %v1018
    %1111 = vrot.lane.b32.xlu0 %v1108, 64
    %v1112 = vpop.permute.xlu0 %1111
    %v1114 = vmul.f32 %v1107, %v1112
    %1116 = vrot.lane.b32.xlu0 %v1114, 32
    %v1117 = vpop.permute.xlu0 %1116
    %v1119 = vadd.f32 %v1109, %v1117
    %v1120 = vtanh.pop %v1119
    %1122 = vrot.lane.b32.xlu0 %v1120, 64
    %v1123 = vpop.permute.xlu0 %1122
    %v1125 = vmul.f32 %v1107, %v1123
    %v1126 = vsel %vm77, 1, 0
    %1127 = vset.pattern.permute.xlu0 0
    %1128 = vperm.xlu0 %1127, %v1126
    %v1129 = vpop.permute.xlu0 %1128
    %vm1130 = vcmp.eq.s32.totalorder %v1129, 1
    %v1131 = vsel %vm1130, %v1125, %v1017
    %1133 = vrot.lane.b32.xlu0 %v1131, 32
    %v1134 = vpop.permute.xlu0 %1133
    %s1136 = scalar_lea.vmem [#allocation2], 56
    %1137 = vst.msk [vmem:[%s1136] sm:$0xff] %vm97, %v1134
    %v1138 = vld [vmem:[#allocation2] sm:$0xff]
    %v1139 = vld [vmem:[#allocation2 + $0x8] sm:$0xff]
    %v1140 = vld [vmem:[#allocation2 + $0x10] sm:$0xff]
    %v1141 = vld [vmem:[#allocation2 + $0x18] sm:$0xff]
    %v1142 = vld [vmem:[#allocation2 + $0x20] sm:$0xff]
    %v1143 = vld [vmem:[#allocation2 + $0x28] sm:$0xff]
    %v1144 = vld [vmem:[#allocation2 + $0x30] sm:$0xff]
    %v1145 = vld [vmem:[#allocation2 + $0x38] sm:$0xff]
    %s1146 = scalar_lea.vmem [#allocation6], 32
    %v1147 = vld [vmem:[%s1146] sm:$0xff]
    %v1148 = vld [vmem:[%s1146 + $0x8] sm:$0xff]
    %v1149 = vld [vmem:[%s1146 + $0x10] sm:$0xff]
    %v1150 = vld [vmem:[%s1146 + $0x18] sm:$0xff]
    %s1151 = scalar_lea.vmem %s4, 1
    %v1152 = vld [vmem:[%s1151] sm:$0x1]
    %v1154 = vlaneseq
    %v1155 = vshrl.u32 %v1154, 7
    %v1156 = vsub.s32 0, %v1155
    %v1157 = vrot.slane %v1152, %v1156
    %v1160 = vsel %vm97, %v1138, 0
    %v1163 = vsel %vm97, %v1139, 0
    %v1166 = vsel %vm97, %v1140, 0
    %v1169 = vsel %vm97, %v1141, 0
    %v1172 = vsel %vm97, %v1142, 0
    %v1175 = vsel %vm97, %v1143, 0
    %v1178 = vsel %vm97, %v1144, 0
    %v1181 = vsel %vm97, %v1145, 0
    %1183 = vmatprep.subr.mxu0 0.0
    %1184 = vmatpush1.msra.mxu0 0.0
    %1185 = vmatprep.subr.mxu0 0.0
    %1186 = vmatpush1.msra.mxu0 0.0
    %1187 = vmatprep.subr.mxu0 0.0
    %1188 = vmatpush1.msra.mxu0 0.0
    %1189 = vmatprep.subr.mxu0 0.0
    %1190 = vmatpush1.msra.mxu0 0.0
    %1191 = vmatprep.subr.mxu0 0.0
    %1192 = vmatpush1.msra.mxu0 0.0
    %1193 = vmatprep.subr.mxu0 0.0
    %1194 = vmatpush1.msra.mxu0 0.0
    %1195 = vmatprep.subr.mxu0 0.0
    %1196 = vmatpush1.msra.mxu0 0.0
    %1197 = vmatprep.subr.mxu0 0.0
    %1198 = vmatpush1.msra.mxu0 0.0
    %1199 = vmatprep.subr.mxu0 0.0
    %1200 = vmatpush1.msra.mxu0 0.0
    %1201 = vmatprep.subr.mxu0 0.0
    %1202 = vmatpush1.msra.mxu0 0.0
    %1203 = vmatprep.subr.mxu0 0.0
    %1204 = vmatpush1.msra.mxu0 0.0
    %1205 = vmatprep.subr.mxu0 0.0
    %1206 = vmatpush1.msra.mxu0 0.0
    %1207 = vmatprep.subr.mxu0 0.0
    %1208 = vmatpush1.msra.mxu0 %v1150
    %1209 = vmatprep.subr.mxu0 0.0
    %1210 = vmatpush1.msra.mxu0 %v1149
    %1211 = vmatprep.subr.mxu0 0.0
    %1212 = vmatpush1.msra.mxu0 %v1148
    %1213 = vmatprep.subr.mxu0 0.0
    %1214 = vmatpush1.msra.mxu0 %v1147
    %1215 = vmatprep.subr.mxu0 0.0
    %1216 = vmatpush2.msra.mxu0 0.0
    %1217 = vmatprep.subr.mxu0 0.0
    %1218 = vmatpush2.msra.mxu0 0.0
    %1219 = vmatprep.subr.mxu0 0.0
    %1220 = vmatpush2.msra.mxu0 0.0
    %1221 = vmatprep.subr.mxu0 0.0
    %1222 = vmatpush2.msra.mxu0 0.0
    %1223 = vmatprep.subr.mxu0 0.0
    %1224 = vmatpush2.msra.mxu0 0.0
    %1225 = vmatprep.subr.mxu0 0.0
    %1226 = vmatpush2.msra.mxu0 0.0
    %1227 = vmatprep.subr.mxu0 0.0
    %1228 = vmatpush2.msra.mxu0 0.0
    %1229 = vmatprep.subr.mxu0 0.0
    %1230 = vmatpush2.msra.mxu0 0.0
    %1231 = vmatprep.subr.mxu0 0.0
    %1232 = vmatpush2.msra.mxu0 0.0
    %1233 = vmatprep.subr.mxu0 0.0
    %1234 = vmatpush2.msra.mxu0 0.0
    %1235 = vmatprep.subr.mxu0 0.0
    %1236 = vmatpush2.msra.mxu0 0.0
    %1237 = vmatprep.subr.mxu0 0.0
    %1238 = vmatpush2.msra.mxu0 0.0
    %1239 = vmatprep.subr.mxu0 0.0
    %1240 = vmatpush2.msra.mxu0 0.0
    %1241 = vmatprep.subr.mxu0 0.0
    %1242 = vmatpush2.msra.mxu0 0.0
    %1243 = vmatprep.subr.mxu0 0.0
    %1244 = vmatpush2.msra.mxu0 0.0
    %1245 = vmatprep.subr.mxu0 0.0
    %1246 = vmatpush2.msra.mxu0 0.0
    %1247 = vmatprep.mubr.f32.mxu0 0.0
    %1248 = vmatmul.mubr.f32.gmra.mxu0 %v1160
    %v1249 = vpop.f32.mrf.mxu0
    %v1250 = vadd.f32 %v1157, %v1249
    %v1251 = vpop.f32.mrf.mxu0
    %1252 = vmatprep.mubr.f32.mxu0 0.0
    %1253 = vmatmul.mubr.f32.gmra.mxu0 %v1163
    %v1254 = vpop.f32.mrf.mxu0
    %v1255 = vadd.f32 %v1157, %v1254
    %v1256 = vpop.f32.mrf.mxu0
    %1257 = vmatprep.mubr.f32.mxu0 0.0
    %1258 = vmatmul.mubr.f32.gmra.mxu0 %v1166
    %v1259 = vpop.f32.mrf.mxu0
    %v1260 = vadd.f32 %v1157, %v1259
    %v1261 = vpop.f32.mrf.mxu0
    %1262 = vmatprep.mubr.f32.mxu0 0.0
    %1263 = vmatmul.mubr.f32.gmra.mxu0 %v1169
    %v1264 = vpop.f32.mrf.mxu0
    %v1265 = vadd.f32 %v1157, %v1264
    %v1266 = vpop.f32.mrf.mxu0
    %1267 = vmatprep.mubr.f32.mxu0 0.0
    %1268 = vmatmul.mubr.f32.gmra.mxu0 %v1172
    %v1269 = vpop.f32.mrf.mxu0
    %v1270 = vadd.f32 %v1157, %v1269
    %v1271 = vpop.f32.mrf.mxu0
    %1272 = vmatprep.mubr.f32.mxu0 0.0
    %1273 = vmatmul.mubr.f32.gmra.mxu0 %v1175
    %v1274 = vpop.f32.mrf.mxu0
    %v1275 = vadd.f32 %v1157, %v1274
    %v1276 = vpop.f32.mrf.mxu0
    %1277 = vmatprep.mubr.f32.mxu0 0.0
    %1278 = vmatmul.mubr.f32.gmra.mxu0 %v1178
    %v1279 = vpop.f32.mrf.mxu0
    %v1280 = vadd.f32 %v1157, %v1279
    %v1281 = vpop.f32.mrf.mxu0
    %1282 = vmatprep.mubr.f32.mxu0 0.0
    %1283 = vmatmul.mubr.f32.gmra.mxu0 %v1181
    %v1284 = vpop.f32.mrf.mxu0
    %v1285 = vadd.f32 %v1157, %v1284
    %v1286 = vpop.f32.mrf.mxu0
    %1287 = vdwg.mxu0
    %s1288 = scalar_lea.vmem [#allocation8], 32
    %v1289 = vld [vmem:[%s1288] sm:$0xff]
    %v1290 = vld [vmem:[%s1288 + $0x8] sm:$0xff]
    %v1291 = vld [vmem:[%s1288 + $0x10] sm:$0xff]
    %v1292 = vld [vmem:[%s1288 + $0x18] sm:$0xff]
    %1293 = vmatprep.subr.mxu0 0.0
    %1294 = vmatpush1.msra.mxu0 0.0
    %1295 = vmatprep.subr.mxu0 0.0
    %1296 = vmatpush1.msra.mxu0 0.0
    %1297 = vmatprep.subr.mxu0 0.0
    %1298 = vmatpush1.msra.mxu0 0.0
    %1299 = vmatprep.subr.mxu0 0.0
    %1300 = vmatpush1.msra.mxu0 0.0
    %1301 = vmatprep.subr.mxu0 0.0
    %1302 = vmatpush1.msra.mxu0 0.0
    %1303 = vmatprep.subr.mxu0 0.0
    %1304 = vmatpush1.msra.mxu0 0.0
    %1305 = vmatprep.subr.mxu0 0.0
    %1306 = vmatpush1.msra.mxu0 0.0
    %1307 = vmatprep.subr.mxu0 0.0
    %1308 = vmatpush1.msra.mxu0 0.0
    %1309 = vmatprep.subr.mxu0 0.0
    %1310 = vmatpush1.msra.mxu0 0.0
    %1311 = vmatprep.subr.mxu0 0.0
    %1312 = vmatpush1.msra.mxu0 0.0
    %1313 = vmatprep.subr.mxu0 0.0
    %1314 = vmatpush1.msra.mxu0 0.0
    %1315 = vmatprep.subr.mxu0 0.0
    %1316 = vmatpush1.msra.mxu0 0.0
    %1317 = vmatprep.subr.mxu0 0.0
    %1318 = vmatpush1.msra.mxu0 %v1292
    %1319 = vmatprep.subr.mxu0 0.0
    %1320 = vmatpush1.msra.mxu0 %v1291
    %1321 = vmatprep.subr.mxu0 0.0
    %1322 = vmatpush1.msra.mxu0 %v1290
    %1323 = vmatprep.subr.mxu0 0.0
    %1324 = vmatpush1.msra.mxu0 %v1289
    %1325 = vmatprep.subr.mxu0 0.0
    %1326 = vmatpush2.msra.mxu0 0.0
    %1327 = vmatprep.subr.mxu0 0.0
    %1328 = vmatpush2.msra.mxu0 0.0
    %1329 = vmatprep.subr.mxu0 0.0
    %1330 = vmatpush2.msra.mxu0 0.0
    %1331 = vmatprep.subr.mxu0 0.0
    %1332 = vmatpush2.msra.mxu0 0.0
    %1333 = vmatprep.subr.mxu0 0.0
    %1334 = vmatpush2.msra.mxu0 0.0
    %1335 = vmatprep.subr.mxu0 0.0
    %1336 = vmatpush2.msra.mxu0 0.0
    %1337 = vmatprep.subr.mxu0 0.0
    %1338 = vmatpush2.msra.mxu0 0.0
    %1339 = vmatprep.subr.mxu0 0.0
    %1340 = vmatpush2.msra.mxu0 0.0
    %1341 = vmatprep.subr.mxu0 0.0
    %1342 = vmatpush2.msra.mxu0 0.0
    %1343 = vmatprep.subr.mxu0 0.0
    %1344 = vmatpush2.msra.mxu0 0.0
    %1345 = vmatprep.subr.mxu0 0.0
    %1346 = vmatpush2.msra.mxu0 0.0
    %1347 = vmatprep.subr.mxu0 0.0
    %1348 = vmatpush2.msra.mxu0 0.0
    %1349 = vmatprep.subr.mxu0 0.0
    %1350 = vmatpush2.msra.mxu0 0.0
    %1351 = vmatprep.subr.mxu0 0.0
    %1352 = vmatpush2.msra.mxu0 0.0
    %1353 = vmatprep.subr.mxu0 0.0
    %1354 = vmatpush2.msra.mxu0 0.0
    %1355 = vmatprep.subr.mxu0 0.0
    %1356 = vmatpush2.msra.mxu0 0.0
    %1357 = vmatprep.mubr.f32.mxu0 0.0
    %1358 = vmatmul.mubr.f32.gmra.mxu0 %v232
    %v1359 = vpop.f32.mrf.mxu0
    %v1360 = vadd.f32 0.0, %v1359
    %v1361 = vpop.f32.mrf.mxu0
    %1362 = vdwg.mxu0
    %v1363 = vadd.f32 %v1250, %v1360
    %v1364 = vxor.u32 %v1363, 2147483648
    %v1365 = vmul.f32 %v1364, 1.442695
    %v1366 = vpow.pop %v1365
    %v1367 = vadd.f32 %v1366, 1.0
    %v1368 = vrcp.pop %v1367
    %v1369 = vmul.f32 1.0, %v1368
    %v1370 = vtanh.pop %v1363
    %v1371 = vmul.f32 %v1369, 0.0
    %1373 = vrot.lane.b32.xlu0 %v1370, 64
    %v1374 = vpop.permute.xlu0 %1373
    %v1376 = vmul.f32 %v1369, %v1374
    %1378 = vrot.lane.b32.xlu0 %v1376, 32
    %v1379 = vpop.permute.xlu0 %1378
    %v1381 = vadd.f32 %v1371, %v1379
    %v1382 = vtanh.pop %v1381
    %1384 = vrot.lane.b32.xlu0 %v1382, 64
    %v1385 = vpop.permute.xlu0 %1384
    %v1387 = vmul.f32 %v1369, %v1385
    %v1388 = vsel %vm333, %v1387, 0.0
    %v1389 = vsel %vm333, %v1381, 0.0
    %1391 = vrot.lane.b32.xlu0 %v1388, 32
    %v1392 = vpop.permute.xlu0 %1391
    %v1393 = vsel %vm97, %v1392, 0
    %1395 = vmatprep.subr.mxu0 0.0
    %1396 = vmatpush1.msra.mxu0 0.0
    %1397 = vmatprep.subr.mxu0 0.0
    %1398 = vmatpush1.msra.mxu0 0.0
    %1399 = vmatprep.subr.mxu0 0.0
    %1400 = vmatpush1.msra.mxu0 0.0
    %1401 = vmatprep.subr.mxu0 0.0
    %1402 = vmatpush1.msra.mxu0 0.0
    %1403 = vmatprep.subr.mxu0 0.0
    %1404 = vmatpush1.msra.mxu0 0.0
    %1405 = vmatprep.subr.mxu0 0.0
    %1406 = vmatpush1.msra.mxu0 0.0
    %1407 = vmatprep.subr.mxu0 0.0
    %1408 = vmatpush1.msra.mxu0 0.0
    %1409 = vmatprep.subr.mxu0 0.0
    %1410 = vmatpush1.msra.mxu0 0.0
    %1411 = vmatprep.subr.mxu0 0.0
    %1412 = vmatpush1.msra.mxu0 0.0
    %1413 = vmatprep.subr.mxu0 0.0
    %1414 = vmatpush1.msra.mxu0 0.0
    %1415 = vmatprep.subr.mxu0 0.0
    %1416 = vmatpush1.msra.mxu0 0.0
    %1417 = vmatprep.subr.mxu0 0.0
    %1418 = vmatpush1.msra.mxu0 0.0
    %1419 = vmatprep.subr.mxu0 0.0
    %1420 = vmatpush1.msra.mxu0 %v1292
    %1421 = vmatprep.subr.mxu0 0.0
    %1422 = vmatpush1.msra.mxu0 %v1291
    %1423 = vmatprep.subr.mxu0 0.0
    %1424 = vmatpush1.msra.mxu0 %v1290
    %1425 = vmatprep.subr.mxu0 0.0
    %1426 = vmatpush1.msra.mxu0 %v1289
    %1427 = vmatprep.subr.mxu0 0.0
    %1428 = vmatpush2.msra.mxu0 0.0
    %1429 = vmatprep.subr.mxu0 0.0
    %1430 = vmatpush2.msra.mxu0 0.0
    %1431 = vmatprep.subr.mxu0 0.0
    %1432 = vmatpush2.msra.mxu0 0.0
    %1433 = vmatprep.subr.mxu0 0.0
    %1434 = vmatpush2.msra.mxu0 0.0
    %1435 = vmatprep.subr.mxu0 0.0
    %1436 = vmatpush2.msra.mxu0 0.0
    %1437 = vmatprep.subr.mxu0 0.0
    %1438 = vmatpush2.msra.mxu0 0.0
    %1439 = vmatprep.subr.mxu0 0.0
    %1440 = vmatpush2.msra.mxu0 0.0
    %1441 = vmatprep.subr.mxu0 0.0
    %1442 = vmatpush2.msra.mxu0 0.0
    %1443 = vmatprep.subr.mxu0 0.0
    %1444 = vmatpush2.msra.mxu0 0.0
    %1445 = vmatprep.subr.mxu0 0.0
    %1446 = vmatpush2.msra.mxu0 0.0
    %1447 = vmatprep.subr.mxu0 0.0
    %1448 = vmatpush2.msra.mxu0 0.0
    %1449 = vmatprep.subr.mxu0 0.0
    %1450 = vmatpush2.msra.mxu0 0.0
    %1451 = vmatprep.subr.mxu0 0.0
    %1452 = vmatpush2.msra.mxu0 0.0
    %1453 = vmatprep.subr.mxu0 0.0
    %1454 = vmatpush2.msra.mxu0 0.0
    %1455 = vmatprep.subr.mxu0 0.0
    %1456 = vmatpush2.msra.mxu0 0.0
    %1457 = vmatprep.subr.mxu0 0.0
    %1458 = vmatpush2.msra.mxu0 0.0
    %1459 = vmatprep.mubr.f32.mxu0 0.0
    %1460 = vmatmul.mubr.f32.gmra.mxu0 %v1393
    %v1461 = vpop.f32.mrf.mxu0
    %v1462 = vadd.f32 0.0, %v1461
    %v1463 = vpop.f32.mrf.mxu0
    %1464 = vdwg.mxu0
    %v1465 = vadd.f32 %v1255, %v1462
    %v1466 = vxor.u32 %v1465, 2147483648
    %v1467 = vmul.f32 %v1466, 1.442695
    %v1468 = vpow.pop %v1467
    %v1469 = vadd.f32 %v1468, 1.0
    %v1470 = vrcp.pop %v1469
    %v1471 = vmul.f32 1.0, %v1470
    %v1472 = vtanh.pop %v1465
    %v1473 = vmul.f32 %v1471, %v1389
    %1475 = vrot.lane.b32.xlu0 %v1472, 64
    %v1476 = vpop.permute.xlu0 %1475
    %v1478 = vmul.f32 %v1471, %v1476
    %1480 = vrot.lane.b32.xlu0 %v1478, 32
    %v1481 = vpop.permute.xlu0 %1480
    %v1483 = vadd.f32 %v1473, %v1481
    %v1484 = vtanh.pop %v1483
    %1486 = vrot.lane.b32.xlu0 %v1484, 64
    %v1487 = vpop.permute.xlu0 %1486
    %v1489 = vmul.f32 %v1471, %v1487
    %v1490 = vsel %vm446, %v1489, %v1388
    %v1491 = vsel %vm446, %v1483, %v1389
    %1493 = vrot.lane.b32.xlu0 %v1490, 32
    %v1494 = vpop.permute.xlu0 %1493
    %v1495 = vsel %vm97, %v1494, 0
    %1497 = vmatprep.subr.mxu0 0.0
    %1498 = vmatpush1.msra.mxu0 0.0
    %1499 = vmatprep.subr.mxu0 0.0
    %1500 = vmatpush1.msra.mxu0 0.0
    %1501 = vmatprep.subr.mxu0 0.0
    %1502 = vmatpush1.msra.mxu0 0.0
    %1503 = vmatprep.subr.mxu0 0.0
    %1504 = vmatpush1.msra.mxu0 0.0
    %1505 = vmatprep.subr.mxu0 0.0
    %1506 = vmatpush1.msra.mxu0 0.0
    %1507 = vmatprep.subr.mxu0 0.0
    %1508 = vmatpush1.msra.mxu0 0.0
    %1509 = vmatprep.subr.mxu0 0.0
    %1510 = vmatpush1.msra.mxu0 0.0
    %1511 = vmatprep.subr.mxu0 0.0
    %1512 = vmatpush1.msra.mxu0 0.0
    %1513 = vmatprep.subr.mxu0 0.0
    %1514 = vmatpush1.msra.mxu0 0.0
    %1515 = vmatprep.subr.mxu0 0.0
    %1516 = vmatpush1.msra.mxu0 0.0
    %1517 = vmatprep.subr.mxu0 0.0
    %1518 = vmatpush1.msra.mxu0 0.0
    %1519 = vmatprep.subr.mxu0 0.0
    %1520 = vmatpush1.msra.mxu0 0.0
    %1521 = vmatprep.subr.mxu0 0.0
    %1522 = vmatpush1.msra.mxu0 %v1292
    %1523 = vmatprep.subr.mxu0 0.0
    %1524 = vmatpush1.msra.mxu0 %v1291
    %1525 = vmatprep.subr.mxu0 0.0
    %1526 = vmatpush1.msra.mxu0 %v1290
    %1527 = vmatprep.subr.mxu0 0.0
    %1528 = vmatpush1.msra.mxu0 %v1289
    %1529 = vmatprep.subr.mxu0 0.0
    %1530 = vmatpush2.msra.mxu0 0.0
    %1531 = vmatprep.subr.mxu0 0.0
    %1532 = vmatpush2.msra.mxu0 0.0
    %1533 = vmatprep.subr.mxu0 0.0
    %1534 = vmatpush2.msra.mxu0 0.0
    %1535 = vmatprep.subr.mxu0 0.0
    %1536 = vmatpush2.msra.mxu0 0.0
    %1537 = vmatprep.subr.mxu0 0.0
    %1538 = vmatpush2.msra.mxu0 0.0
    %1539 = vmatprep.subr.mxu0 0.0
    %1540 = vmatpush2.msra.mxu0 0.0
    %1541 = vmatprep.subr.mxu0 0.0
    %1542 = vmatpush2.msra.mxu0 0.0
    %1543 = vmatprep.subr.mxu0 0.0
    %1544 = vmatpush2.msra.mxu0 0.0
    %1545 = vmatprep.subr.mxu0 0.0
    %1546 = vmatpush2.msra.mxu0 0.0
    %1547 = vmatprep.subr.mxu0 0.0
    %1548 = vmatpush2.msra.mxu0 0.0
    %1549 = vmatprep.subr.mxu0 0.0
    %1550 = vmatpush2.msra.mxu0 0.0
    %1551 = vmatprep.subr.mxu0 0.0
    %1552 = vmatpush2.msra.mxu0 0.0
    %1553 = vmatprep.subr.mxu0 0.0
    %1554 = vmatpush2.msra.mxu0 0.0
    %1555 = vmatprep.subr.mxu0 0.0
    %1556 = vmatpush2.msra.mxu0 0.0
    %1557 = vmatprep.subr.mxu0 0.0
    %1558 = vmatpush2.msra.mxu0 0.0
    %1559 = vmatprep.subr.mxu0 0.0
    %1560 = vmatpush2.msra.mxu0 0.0
    %1561 = vmatprep.mubr.f32.mxu0 0.0
    %1562 = vmatmul.mubr.f32.gmra.mxu0 %v1495
    %v1563 = vpop.f32.mrf.mxu0
    %v1564 = vadd.f32 0.0, %v1563
    %v1565 = vpop.f32.mrf.mxu0
    %1566 = vdwg.mxu0
    %v1567 = vadd.f32 %v1260, %v1564
    %v1568 = vxor.u32 %v1567, 2147483648
    %v1569 = vmul.f32 %v1568, 1.442695
    %v1570 = vpow.pop %v1569
    %v1571 = vadd.f32 %v1570, 1.0
    %v1572 = vrcp.pop %v1571
    %v1573 = vmul.f32 1.0, %v1572
    %v1574 = vtanh.pop %v1567
    %v1575 = vmul.f32 %v1573, %v1491
    %1577 = vrot.lane.b32.xlu0 %v1574, 64
    %v1578 = vpop.permute.xlu0 %1577
    %v1580 = vmul.f32 %v1573, %v1578
    %1582 = vrot.lane.b32.xlu0 %v1580, 32
    %v1583 = vpop.permute.xlu0 %1582
    %v1585 = vadd.f32 %v1575, %v1583
    %v1586 = vtanh.pop %v1585
    %1588 = vrot.lane.b32.xlu0 %v1586, 64
    %v1589 = vpop.permute.xlu0 %1588
    %v1591 = vmul.f32 %v1573, %v1589
    %v1592 = vsel %vm560, %v1591, %v1490
    %v1593 = vsel %vm560, %v1585, %v1491
    %1595 = vrot.lane.b32.xlu0 %v1592, 32
    %v1596 = vpop.permute.xlu0 %1595
    %v1597 = vsel %vm97, %v1596, 0
    %1599 = vmatprep.subr.mxu0 0.0
    %1600 = vmatpush1.msra.mxu0 0.0
    %1601 = vmatprep.subr.mxu0 0.0
    %1602 = vmatpush1.msra.mxu0 0.0
    %1603 = vmatprep.subr.mxu0 0.0
    %1604 = vmatpush1.msra.mxu0 0.0
    %1605 = vmatprep.subr.mxu0 0.0
    %1606 = vmatpush1.msra.mxu0 0.0
    %1607 = vmatprep.subr.mxu0 0.0
    %1608 = vmatpush1.msra.mxu0 0.0
    %1609 = vmatprep.subr.mxu0 0.0
    %1610 = vmatpush1.msra.mxu0 0.0
    %1611 = vmatprep.subr.mxu0 0.0
    %1612 = vmatpush1.msra.mxu0 0.0
    %1613 = vmatprep.subr.mxu0 0.0
    %1614 = vmatpush1.msra.mxu0 0.0
    %1615 = vmatprep.subr.mxu0 0.0
    %1616 = vmatpush1.msra.mxu0 0.0
    %1617 = vmatprep.subr.mxu0 0.0
    %1618 = vmatpush1.msra.mxu0 0.0
    %1619 = vmatprep.subr.mxu0 0.0
    %1620 = vmatpush1.msra.mxu0 0.0
    %1621 = vmatprep.subr.mxu0 0.0
    %1622 = vmatpush1.msra.mxu0 0.0
    %1623 = vmatprep.subr.mxu0 0.0
    %1624 = vmatpush1.msra.mxu0 %v1292
    %1625 = vmatprep.subr.mxu0 0.0
    %1626 = vmatpush1.msra.mxu0 %v1291
    %1627 = vmatprep.subr.mxu0 0.0
    %1628 = vmatpush1.msra.mxu0 %v1290
    %1629 = vmatprep.subr.mxu0 0.0
    %1630 = vmatpush1.msra.mxu0 %v1289
    %1631 = vmatprep.subr.mxu0 0.0
    %1632 = vmatpush2.msra.mxu0 0.0
    %1633 = vmatprep.subr.mxu0 0.0
    %1634 = vmatpush2.msra.mxu0 0.0
    %1635 = vmatprep.subr.mxu0 0.0
    %1636 = vmatpush2.msra.mxu0 0.0
    %1637 = vmatprep.subr.mxu0 0.0
    %1638 = vmatpush2.msra.mxu0 0.0
    %1639 = vmatprep.subr.mxu0 0.0
    %1640 = vmatpush2.msra.mxu0 0.0
    %1641 = vmatprep.subr.mxu0 0.0
    %1642 = vmatpush2.msra.mxu0 0.0
    %1643 = vmatprep.subr.mxu0 0.0
    %1644 = vmatpush2.msra.mxu0 0.0
    %1645 = vmatprep.subr.mxu0 0.0
    %1646 = vmatpush2.msra.mxu0 0.0
    %1647 = vmatprep.subr.mxu0 0.0
    %1648 = vmatpush2.msra.mxu0 0.0
    %1649 = vmatprep.subr.mxu0 0.0
    %1650 = vmatpush2.msra.mxu0 0.0
    %1651 = vmatprep.subr.mxu0 0.0
    %1652 = vmatpush2.msra.mxu0 0.0
    %1653 = vmatprep.subr.mxu0 0.0
    %1654 = vmatpush2.msra.mxu0 0.0
    %1655 = vmatprep.subr.mxu0 0.0
    %1656 = vmatpush2.msra.mxu0 0.0
    %1657 = vmatprep.subr.mxu0 0.0
    %1658 = vmatpush2.msra.mxu0 0.0
    %1659 = vmatprep.subr.mxu0 0.0
    %1660 = vmatpush2.msra.mxu0 0.0
    %1661 = vmatprep.subr.mxu0 0.0
    %1662 = vmatpush2.msra.mxu0 0.0
    %1663 = vmatprep.mubr.f32.mxu0 0.0
    %1664 = vmatmul.mubr.f32.gmra.mxu0 %v1597
    %v1665 = vpop.f32.mrf.mxu0
    %v1666 = vadd.f32 0.0, %v1665
    %v1667 = vpop.f32.mrf.mxu0
    %1668 = vdwg.mxu0
    %v1669 = vadd.f32 %v1265, %v1666
    %v1670 = vxor.u32 %v1669, 2147483648
    %v1671 = vmul.f32 %v1670, 1.442695
    %v1672 = vpow.pop %v1671
    %v1673 = vadd.f32 %v1672, 1.0
    %v1674 = vrcp.pop %v1673
    %v1675 = vmul.f32 1.0, %v1674
    %v1676 = vtanh.pop %v1669
    %v1677 = vmul.f32 %v1675, %v1593
    %1679 = vrot.lane.b32.xlu0 %v1676, 64
    %v1680 = vpop.permute.xlu0 %1679
    %v1682 = vmul.f32 %v1675, %v1680
    %1684 = vrot.lane.b32.xlu0 %v1682, 32
    %v1685 = vpop.permute.xlu0 %1684
    %v1687 = vadd.f32 %v1677, %v1685
    %v1688 = vtanh.pop %v1687
    %1690 = vrot.lane.b32.xlu0 %v1688, 64
    %v1691 = vpop.permute.xlu0 %1690
    %v1693 = vmul.f32 %v1675, %v1691
    %v1694 = vsel %vm674, %v1693, %v1592
    %v1695 = vsel %vm674, %v1687, %v1593
    %1697 = vrot.lane.b32.xlu0 %v1694, 32
    %v1698 = vpop.permute.xlu0 %1697
    %v1699 = vsel %vm97, %v1698, 0
    %1701 = vmatprep.subr.mxu0 0.0
    %1702 = vmatpush1.msra.mxu0 0.0
    %1703 = vmatprep.subr.mxu0 0.0
    %1704 = vmatpush1.msra.mxu0 0.0
    %1705 = vmatprep.subr.mxu0 0.0
    %1706 = vmatpush1.msra.mxu0 0.0
    %1707 = vmatprep.subr.mxu0 0.0
    %1708 = vmatpush1.msra.mxu0 0.0
    %1709 = vmatprep.subr.mxu0 0.0
    %1710 = vmatpush1.msra.mxu0 0.0
    %1711 = vmatprep.subr.mxu0 0.0
    %1712 = vmatpush1.msra.mxu0 0.0
    %1713 = vmatprep.subr.mxu0 0.0
    %1714 = vmatpush1.msra.mxu0 0.0
    %1715 = vmatprep.subr.mxu0 0.0
    %1716 = vmatpush1.msra.mxu0 0.0
    %1717 = vmatprep.subr.mxu0 0.0
    %1718 = vmatpush1.msra.mxu0 0.0
    %1719 = vmatprep.subr.mxu0 0.0
    %1720 = vmatpush1.msra.mxu0 0.0
    %1721 = vmatprep.subr.mxu0 0.0
    %1722 = vmatpush1.msra.mxu0 0.0
    %1723 = vmatprep.subr.mxu0 0.0
    %1724 = vmatpush1.msra.mxu0 0.0
    %1725 = vmatprep.subr.mxu0 0.0
    %1726 = vmatpush1.msra.mxu0 %v1292
    %1727 = vmatprep.subr.mxu0 0.0
    %1728 = vmatpush1.msra.mxu0 %v1291
    %1729 = vmatprep.subr.mxu0 0.0
    %1730 = vmatpush1.msra.mxu0 %v1290
    %1731 = vmatprep.subr.mxu0 0.0
    %1732 = vmatpush1.msra.mxu0 %v1289
    %1733 = vmatprep.subr.mxu0 0.0
    %1734 = vmatpush2.msra.mxu0 0.0
    %1735 = vmatprep.subr.mxu0 0.0
    %1736 = vmatpush2.msra.mxu0 0.0
    %1737 = vmatprep.subr.mxu0 0.0
    %1738 = vmatpush2.msra.mxu0 0.0
    %1739 = vmatprep.subr.mxu0 0.0
    %1740 = vmatpush2.msra.mxu0 0.0
    %1741 = vmatprep.subr.mxu0 0.0
    %1742 = vmatpush2.msra.mxu0 0.0
    %1743 = vmatprep.subr.mxu0 0.0
    %1744 = vmatpush2.msra.mxu0 0.0
    %1745 = vmatprep.subr.mxu0 0.0
    %1746 = vmatpush2.msra.mxu0 0.0
    %1747 = vmatprep.subr.mxu0 0.0
    %1748 = vmatpush2.msra.mxu0 0.0
    %1749 = vmatprep.subr.mxu0 0.0
    %1750 = vmatpush2.msra.mxu0 0.0
    %1751 = vmatprep.subr.mxu0 0.0
    %1752 = vmatpush2.msra.mxu0 0.0
    %1753 = vmatprep.subr.mxu0 0.0
    %1754 = vmatpush2.msra.mxu0 0.0
    %1755 = vmatprep.subr.mxu0 0.0
    %1756 = vmatpush2.msra.mxu0 0.0
    %1757 = vmatprep.subr.mxu0 0.0
    %1758 = vmatpush2.msra.mxu0 0.0
    %1759 = vmatprep.subr.mxu0 0.0
    %1760 = vmatpush2.msra.mxu0 0.0
    %1761 = vmatprep.subr.mxu0 0.0
    %1762 = vmatpush2.msra.mxu0 0.0
    %1763 = vmatprep.subr.mxu0 0.0
    %1764 = vmatpush2.msra.mxu0 0.0
    %1765 = vmatprep.mubr.f32.mxu0 0.0
    %1766 = vmatmul.mubr.f32.gmra.mxu0 %v1699
    %v1767 = vpop.f32.mrf.mxu0
    %v1768 = vadd.f32 0.0, %v1767
    %v1769 = vpop.f32.mrf.mxu0
    %1770 = vdwg.mxu0
    %v1771 = vadd.f32 %v1270, %v1768
    %v1772 = vxor.u32 %v1771, 2147483648
    %v1773 = vmul.f32 %v1772, 1.442695
    %v1774 = vpow.pop %v1773
    %v1775 = vadd.f32 %v1774, 1.0
    %v1776 = vrcp.pop %v1775
    %v1777 = vmul.f32 1.0, %v1776
    %v1778 = vtanh.pop %v1771
    %v1779 = vmul.f32 %v1777, %v1695
    %1781 = vrot.lane.b32.xlu0 %v1778, 64
    %v1782 = vpop.permute.xlu0 %1781
    %v1784 = vmul.f32 %v1777, %v1782
    %1786 = vrot.lane.b32.xlu0 %v1784, 32
    %v1787 = vpop.permute.xlu0 %1786
    %v1789 = vadd.f32 %v1779, %v1787
    %v1790 = vtanh.pop %v1789
    %1792 = vrot.lane.b32.xlu0 %v1790, 64
    %v1793 = vpop.permute.xlu0 %1792
    %v1795 = vmul.f32 %v1777, %v1793
    %v1796 = vsel %vm788, %v1795, %v1694
    %v1797 = vsel %vm788, %v1789, %v1695
    %1799 = vrot.lane.b32.xlu0 %v1796, 32
    %v1800 = vpop.permute.xlu0 %1799
    %v1801 = vsel %vm97, %v1800, 0
    %1803 = vmatprep.subr.mxu0 0.0
    %1804 = vmatpush1.msra.mxu0 0.0
    %1805 = vmatprep.subr.mxu0 0.0
    %1806 = vmatpush1.msra.mxu0 0.0
    %1807 = vmatprep.subr.mxu0 0.0
    %1808 = vmatpush1.msra.mxu0 0.0
    %1809 = vmatprep.subr.mxu0 0.0
    %1810 = vmatpush1.msra.mxu0 0.0
    %1811 = vmatprep.subr.mxu0 0.0
    %1812 = vmatpush1.msra.mxu0 0.0
    %1813 = vmatprep.subr.mxu0 0.0
    %1814 = vmatpush1.msra.mxu0 0.0
    %1815 = vmatprep.subr.mxu0 0.0
    %1816 = vmatpush1.msra.mxu0 0.0
    %1817 = vmatprep.subr.mxu0 0.0
    %1818 = vmatpush1.msra.mxu0 0.0
    %1819 = vmatprep.subr.mxu0 0.0
    %1820 = vmatpush1.msra.mxu0 0.0
    %1821 = vmatprep.subr.mxu0 0.0
    %1822 = vmatpush1.msra.mxu0 0.0
    %1823 = vmatprep.subr.mxu0 0.0
    %1824 = vmatpush1.msra.mxu0 0.0
    %1825 = vmatprep.subr.mxu0 0.0
    %1826 = vmatpush1.msra.mxu0 0.0
    %1827 = vmatprep.subr.mxu0 0.0
    %1828 = vmatpush1.msra.mxu0 %v1292
    %1829 = vmatprep.subr.mxu0 0.0
    %1830 = vmatpush1.msra.mxu0 %v1291
    %1831 = vmatprep.subr.mxu0 0.0
    %1832 = vmatpush1.msra.mxu0 %v1290
    %1833 = vmatprep.subr.mxu0 0.0
    %1834 = vmatpush1.msra.mxu0 %v1289
    %1835 = vmatprep.subr.mxu0 0.0
    %1836 = vmatpush2.msra.mxu0 0.0
    %1837 = vmatprep.subr.mxu0 0.0
    %1838 = vmatpush2.msra.mxu0 0.0
    %1839 = vmatprep.subr.mxu0 0.0
    %1840 = vmatpush2.msra.mxu0 0.0
    %1841 = vmatprep.subr.mxu0 0.0
    %1842 = vmatpush2.msra.mxu0 0.0
    %1843 = vmatprep.subr.mxu0 0.0
    %1844 = vmatpush2.msra.mxu0 0.0
    %1845 = vmatprep.subr.mxu0 0.0
    %1846 = vmatpush2.msra.mxu0 0.0
    %1847 = vmatprep.subr.mxu0 0.0
    %1848 = vmatpush2.msra.mxu0 0.0
    %1849 = vmatprep.subr.mxu0 0.0
    %1850 = vmatpush2.msra.mxu0 0.0
    %1851 = vmatprep.subr.mxu0 0.0
    %1852 = vmatpush2.msra.mxu0 0.0
    %1853 = vmatprep.subr.mxu0 0.0
    %1854 = vmatpush2.msra.mxu0 0.0
    %1855 = vmatprep.subr.mxu0 0.0
    %1856 = vmatpush2.msra.mxu0 0.0
    %1857 = vmatprep.subr.mxu0 0.0
    %1858 = vmatpush2.msra.mxu0 0.0
    %1859 = vmatprep.subr.mxu0 0.0
    %1860 = vmatpush2.msra.mxu0 0.0
    %1861 = vmatprep.subr.mxu0 0.0
    %1862 = vmatpush2.msra.mxu0 0.0
    %1863 = vmatprep.subr.mxu0 0.0
    %1864 = vmatpush2.msra.mxu0 0.0
    %1865 = vmatprep.subr.mxu0 0.0
    %1866 = vmatpush2.msra.mxu0 0.0
    %1867 = vmatprep.mubr.f32.mxu0 0.0
    %1868 = vmatmul.mubr.f32.gmra.mxu0 %v1801
    %v1869 = vpop.f32.mrf.mxu0
    %v1870 = vadd.f32 0.0, %v1869
    %v1871 = vpop.f32.mrf.mxu0
    %1872 = vdwg.mxu0
    %v1873 = vadd.f32 %v1275, %v1870
    %v1874 = vxor.u32 %v1873, 2147483648
    %v1875 = vmul.f32 %v1874, 1.442695
    %v1876 = vpow.pop %v1875
    %v1877 = vadd.f32 %v1876, 1.0
    %v1878 = vrcp.pop %v1877
    %v1879 = vmul.f32 1.0, %v1878
    %v1880 = vtanh.pop %v1873
    %v1881 = vmul.f32 %v1879, %v1797
    %1883 = vrot.lane.b32.xlu0 %v1880, 64
    %v1884 = vpop.permute.xlu0 %1883
    %v1886 = vmul.f32 %v1879, %v1884
    %1888 = vrot.lane.b32.xlu0 %v1886, 32
    %v1889 = vpop.permute.xlu0 %1888
    %v1891 = vadd.f32 %v1881, %v1889
    %v1892 = vtanh.pop %v1891
    %1894 = vrot.lane.b32.xlu0 %v1892, 64
    %v1895 = vpop.permute.xlu0 %1894
    %v1897 = vmul.f32 %v1879, %v1895
    %v1898 = vsel %vm902, %v1897, %v1796
    %v1899 = vsel %vm902, %v1891, %v1797
    %1901 = vrot.lane.b32.xlu0 %v1898, 32
    %v1902 = vpop.permute.xlu0 %1901
    %v1903 = vsel %vm97, %v1902, 0
    %1905 = vmatprep.subr.mxu0 0.0
    %1906 = vmatpush1.msra.mxu0 0.0
    %1907 = vmatprep.subr.mxu0 0.0
    %1908 = vmatpush1.msra.mxu0 0.0
    %1909 = vmatprep.subr.mxu0 0.0
    %1910 = vmatpush1.msra.mxu0 0.0
    %1911 = vmatprep.subr.mxu0 0.0
    %1912 = vmatpush1.msra.mxu0 0.0
    %1913 = vmatprep.subr.mxu0 0.0
    %1914 = vmatpush1.msra.mxu0 0.0
    %1915 = vmatprep.subr.mxu0 0.0
    %1916 = vmatpush1.msra.mxu0 0.0
    %1917 = vmatprep.subr.mxu0 0.0
    %1918 = vmatpush1.msra.mxu0 0.0
    %1919 = vmatprep.subr.mxu0 0.0
    %1920 = vmatpush1.msra.mxu0 0.0
    %1921 = vmatprep.subr.mxu0 0.0
    %1922 = vmatpush1.msra.mxu0 0.0
    %1923 = vmatprep.subr.mxu0 0.0
    %1924 = vmatpush1.msra.mxu0 0.0
    %1925 = vmatprep.subr.mxu0 0.0
    %1926 = vmatpush1.msra.mxu0 0.0
    %1927 = vmatprep.subr.mxu0 0.0
    %1928 = vmatpush1.msra.mxu0 0.0
    %1929 = vmatprep.subr.mxu0 0.0
    %1930 = vmatpush1.msra.mxu0 %v1292
    %1931 = vmatprep.subr.mxu0 0.0
    %1932 = vmatpush1.msra.mxu0 %v1291
    %1933 = vmatprep.subr.mxu0 0.0
    %1934 = vmatpush1.msra.mxu0 %v1290
    %1935 = vmatprep.subr.mxu0 0.0
    %1936 = vmatpush1.msra.mxu0 %v1289
    %1937 = vmatprep.subr.mxu0 0.0
    %1938 = vmatpush2.msra.mxu0 0.0
    %1939 = vmatprep.subr.mxu0 0.0
    %1940 = vmatpush2.msra.mxu0 0.0
    %1941 = vmatprep.subr.mxu0 0.0
    %1942 = vmatpush2.msra.mxu0 0.0
    %1943 = vmatprep.subr.mxu0 0.0
    %1944 = vmatpush2.msra.mxu0 0.0
    %1945 = vmatprep.subr.mxu0 0.0
    %1946 = vmatpush2.msra.mxu0 0.0
    %1947 = vmatprep.subr.mxu0 0.0
    %1948 = vmatpush2.msra.mxu0 0.0
    %1949 = vmatprep.subr.mxu0 0.0
    %1950 = vmatpush2.msra.mxu0 0.0
    %1951 = vmatprep.subr.mxu0 0.0
    %1952 = vmatpush2.msra.mxu0 0.0
    %1953 = vmatprep.subr.mxu0 0.0
    %1954 = vmatpush2.msra.mxu0 0.0
    %1955 = vmatprep.subr.mxu0 0.0
    %1956 = vmatpush2.msra.mxu0 0.0
    %1957 = vmatprep.subr.mxu0 0.0
    %1958 = vmatpush2.msra.mxu0 0.0
    %1959 = vmatprep.subr.mxu0 0.0
    %1960 = vmatpush2.msra.mxu0 0.0
    %1961 = vmatprep.subr.mxu0 0.0
    %1962 = vmatpush2.msra.mxu0 0.0
    %1963 = vmatprep.subr.mxu0 0.0
    %1964 = vmatpush2.msra.mxu0 0.0
    %1965 = vmatprep.subr.mxu0 0.0
    %1966 = vmatpush2.msra.mxu0 0.0
    %1967 = vmatprep.subr.mxu0 0.0
    %1968 = vmatpush2.msra.mxu0 0.0
    %1969 = vmatprep.mubr.f32.mxu0 0.0
    %1970 = vmatmul.mubr.f32.gmra.mxu0 %v1903
    %v1971 = vpop.f32.mrf.mxu0
    %v1972 = vadd.f32 0.0, %v1971
    %v1973 = vpop.f32.mrf.mxu0
    %1974 = vdwg.mxu0
    %v1975 = vadd.f32 %v1280, %v1972
    %v1976 = vxor.u32 %v1975, 2147483648
    %v1977 = vmul.f32 %v1976, 1.442695
    %v1978 = vpow.pop %v1977
    %v1979 = vadd.f32 %v1978, 1.0
    %v1980 = vrcp.pop %v1979
    %v1981 = vmul.f32 1.0, %v1980
    %v1982 = vtanh.pop %v1975
    %v1983 = vmul.f32 %v1981, %v1899
    %1985 = vrot.lane.b32.xlu0 %v1982, 64
    %v1986 = vpop.permute.xlu0 %1985
    %v1988 = vmul.f32 %v1981, %v1986
    %1990 = vrot.lane.b32.xlu0 %v1988, 32
    %v1991 = vpop.permute.xlu0 %1990
    %v1993 = vadd.f32 %v1983, %v1991
    %v1994 = vtanh.pop %v1993
    %1996 = vrot.lane.b32.xlu0 %v1994, 64
    %v1997 = vpop.permute.xlu0 %1996
    %v1999 = vmul.f32 %v1981, %v1997
    %v2000 = vsel %vm1016, %v1999, %v1898
    %v2001 = vsel %vm1016, %v1993, %v1899
    %2003 = vrot.lane.b32.xlu0 %v2000, 32
    %v2004 = vpop.permute.xlu0 %2003
    %v2005 = vsel %vm97, %v2004, 0
    %2007 = vmatprep.subr.mxu0 0.0
    %2008 = vmatpush1.msra.mxu0 0.0
    %2009 = vmatprep.subr.mxu0 0.0
    %2010 = vmatpush1.msra.mxu0 0.0
    %2011 = vmatprep.subr.mxu0 0.0
    %2012 = vmatpush1.msra.mxu0 0.0
    %2013 = vmatprep.subr.mxu0 0.0
    %2014 = vmatpush1.msra.mxu0 0.0
    %2015 = vmatprep.subr.mxu0 0.0
    %2016 = vmatpush1.msra.mxu0 0.0
    %2017 = vmatprep.subr.mxu0 0.0
    %2018 = vmatpush1.msra.mxu0 0.0
    %2019 = vmatprep.subr.mxu0 0.0
    %2020 = vmatpush1.msra.mxu0 0.0
    %2021 = vmatprep.subr.mxu0 0.0
    %2022 = vmatpush1.msra.mxu0 0.0
    %2023 = vmatprep.subr.mxu0 0.0
    %2024 = vmatpush1.msra.mxu0 0.0
    %2025 = vmatprep.subr.mxu0 0.0
    %2026 = vmatpush1.msra.mxu0 0.0
    %2027 = vmatprep.subr.mxu0 0.0
    %2028 = vmatpush1.msra.mxu0 0.0
    %2029 = vmatprep.subr.mxu0 0.0
    %2030 = vmatpush1.msra.mxu0 0.0
    %2031 = vmatprep.subr.mxu0 0.0
    %2032 = vmatpush1.msra.mxu0 %v1292
    %2033 = vmatprep.subr.mxu0 0.0
    %2034 = vmatpush1.msra.mxu0 %v1291
    %2035 = vmatprep.subr.mxu0 0.0
    %2036 = vmatpush1.msra.mxu0 %v1290
    %2037 = vmatprep.subr.mxu0 0.0
    %2038 = vmatpush1.msra.mxu0 %v1289
    %2039 = vmatprep.subr.mxu0 0.0
    %2040 = vmatpush2.msra.mxu0 0.0
    %2041 = vmatprep.subr.mxu0 0.0
    %2042 = vmatpush2.msra.mxu0 0.0
    %2043 = vmatprep.subr.mxu0 0.0
    %2044 = vmatpush2.msra.mxu0 0.0
    %2045 = vmatprep.subr.mxu0 0.0
    %2046 = vmatpush2.msra.mxu0 0.0
    %2047 = vmatprep.subr.mxu0 0.0
    %2048 = vmatpush2.msra.mxu0 0.0
    %2049 = vmatprep.subr.mxu0 0.0
    %2050 = vmatpush2.msra.mxu0 0.0
    %2051 = vmatprep.subr.mxu0 0.0
    %2052 = vmatpush2.msra.mxu0 0.0
    %2053 = vmatprep.subr.mxu0 0.0
    %2054 = vmatpush2.msra.mxu0 0.0
    %2055 = vmatprep.subr.mxu0 0.0
    %2056 = vmatpush2.msra.mxu0 0.0
    %2057 = vmatprep.subr.mxu0 0.0
    %2058 = vmatpush2.msra.mxu0 0.0
    %2059 = vmatprep.subr.mxu0 0.0
    %2060 = vmatpush2.msra.mxu0 0.0
    %2061 = vmatprep.subr.mxu0 0.0
    %2062 = vmatpush2.msra.mxu0 0.0
    %2063 = vmatprep.subr.mxu0 0.0
    %2064 = vmatpush2.msra.mxu0 0.0
    %2065 = vmatprep.subr.mxu0 0.0
    %2066 = vmatpush2.msra.mxu0 0.0
    %2067 = vmatprep.subr.mxu0 0.0
    %2068 = vmatpush2.msra.mxu0 0.0
    %2069 = vmatprep.subr.mxu0 0.0
    %2070 = vmatpush2.msra.mxu0 0.0
    %2071 = vmatprep.mubr.f32.mxu0 0.0
    %2072 = vmatmul.mubr.f32.gmra.mxu0 %v2005
    %v2073 = vpop.f32.mrf.mxu0
    %v2074 = vadd.f32 0.0, %v2073
    %v2075 = vpop.f32.mrf.mxu0
    %2076 = vdwg.mxu0
    %v2077 = vadd.f32 %v1285, %v2074
    %v2078 = vxor.u32 %v2077, 2147483648
    %v2079 = vmul.f32 %v2078, 1.442695
    %v2080 = vpow.pop %v2079
    %v2081 = vadd.f32 %v2080, 1.0
    %v2082 = vrcp.pop %v2081
    %v2083 = vmul.f32 1.0, %v2082
    %v2084 = vtanh.pop %v2077
    %v2085 = vmul.f32 %v2083, %v2001
    %2087 = vrot.lane.b32.xlu0 %v2084, 64
    %v2088 = vpop.permute.xlu0 %2087
    %v2090 = vmul.f32 %v2083, %v2088
    %2092 = vrot.lane.b32.xlu0 %v2090, 32
    %v2093 = vpop.permute.xlu0 %2092
    %v2095 = vadd.f32 %v2085, %v2093
    %v2096 = vtanh.pop %v2095
    %2098 = vrot.lane.b32.xlu0 %v2096, 64
    %v2099 = vpop.permute.xlu0 %2098
    %v2101 = vmul.f32 %v2083, %v2099
    %v2102 = vsel %vm1130, %v2101, %v2000
    %v2103 = vld [vmem:[%s5] sm:$0xff]
    %v2104 = vld [vmem:[%s5 + $0x8] sm:$0xff]
    %v2105 = vld [vmem:[%s5 + $0x10] sm:$0xff]
    %v2106 = vld [vmem:[%s5 + $0x18] sm:$0xff]
    %v2107 = vld [vmem:[#allocation3] sm:$0x1]
    %v2109 = vlaneseq
    %v2110 = vshrl.u32 %v2109, 7
    %v2111 = vsub.s32 0, %v2110
    %v2112 = vrot.slane %v2107, %v2111
    %2115 = vrot.lane.b32.xlu0 %v2102, 32
    %v2116 = vpop.permute.xlu0 %2115
    %v2117 = vsel %vm97, %v2116, 0
    %2119 = vmatprep.subr.mxu0 0.0
    %2120 = vmatpush1.msra.mxu0 0.0
    %2121 = vmatprep.subr.mxu0 0.0
    %2122 = vmatpush1.msra.mxu0 0.0
    %2123 = vmatprep.subr.mxu0 0.0
    %2124 = vmatpush1.msra.mxu0 0.0
    %2125 = vmatprep.subr.mxu0 0.0
    %2126 = vmatpush1.msra.mxu0 0.0
    %2127 = vmatprep.subr.mxu0 0.0
    %2128 = vmatpush1.msra.mxu0 0.0
    %2129 = vmatprep.subr.mxu0 0.0
    %2130 = vmatpush1.msra.mxu0 0.0
    %2131 = vmatprep.subr.mxu0 0.0
    %2132 = vmatpush1.msra.mxu0 0.0
    %2133 = vmatprep.subr.mxu0 0.0
    %2134 = vmatpush1.msra.mxu0 0.0
    %2135 = vmatprep.subr.mxu0 0.0
    %2136 = vmatpush1.msra.mxu0 0.0
    %2137 = vmatprep.subr.mxu0 0.0
    %2138 = vmatpush1.msra.mxu0 0.0
    %2139 = vmatprep.subr.mxu0 0.0
    %2140 = vmatpush1.msra.mxu0 0.0
    %2141 = vmatprep.subr.mxu0 0.0
    %2142 = vmatpush1.msra.mxu0 0.0
    %2143 = vmatprep.subr.mxu0 0.0
    %2144 = vmatpush1.msra.mxu0 %v2106
    %2145 = vmatprep.subr.mxu0 0.0
    %2146 = vmatpush1.msra.mxu0 %v2105
    %2147 = vmatprep.subr.mxu0 0.0
    %2148 = vmatpush1.msra.mxu0 %v2104
    %2149 = vmatprep.subr.mxu0 0.0
    %2150 = vmatpush1.msra.mxu0 %v2103
    %2151 = vmatprep.subr.mxu0 0.0
    %2152 = vmatpush2.msra.mxu0 0.0
    %2153 = vmatprep.subr.mxu0 0.0
    %2154 = vmatpush2.msra.mxu0 0.0
    %2155 = vmatprep.subr.mxu0 0.0
    %2156 = vmatpush2.msra.mxu0 0.0
    %2157 = vmatprep.subr.mxu0 0.0
    %2158 = vmatpush2.msra.mxu0 0.0
    %2159 = vmatprep.subr.mxu0 0.0
    %2160 = vmatpush2.msra.mxu0 0.0
    %2161 = vmatprep.subr.mxu0 0.0
    %2162 = vmatpush2.msra.mxu0 0.0
    %2163 = vmatprep.subr.mxu0 0.0
    %2164 = vmatpush2.msra.mxu0 0.0
    %2165 = vmatprep.subr.mxu0 0.0
    %2166 = vmatpush2.msra.mxu0 0.0
    %2167 = vmatprep.subr.mxu0 0.0
    %2168 = vmatpush2.msra.mxu0 0.0
    %2169 = vmatprep.subr.mxu0 0.0
    %2170 = vmatpush2.msra.mxu0 0.0
    %2171 = vmatprep.subr.mxu0 0.0
    %2172 = vmatpush2.msra.mxu0 0.0
    %2173 = vmatprep.subr.mxu0 0.0
    %2174 = vmatpush2.msra.mxu0 0.0
    %2175 = vmatprep.subr.mxu0 0.0
    %2176 = vmatpush2.msra.mxu0 0.0
    %2177 = vmatprep.subr.mxu0 0.0
    %2178 = vmatpush2.msra.mxu0 0.0
    %2179 = vmatprep.subr.mxu0 0.0
    %2180 = vmatpush2.msra.mxu0 0.0
    %2181 = vmatprep.subr.mxu0 0.0
    %2182 = vmatpush2.msra.mxu0 0.0
    %2183 = vmatprep.mubr.f32.mxu0 0.0
    %2184 = vmatmul.mubr.f32.gmra.mxu0 %v2117
    %v2185 = vpop.f32.mrf.mxu0
    %v2186 = vadd.f32 %v2112, %v2185
    %v2187 = vpop.f32.mrf.mxu0
    %2188 = vdwg.mxu0
    %v2189 = vxor.u32 %v2186, 2147483648
    %v2190 = vmul.f32 %v2189, 1.442695
    %v2191 = vpow.pop %v2190
    %v2192 = vadd.f32 %v2191, 1.0
    %v2193 = vrcp.pop %v2192
    %v2194 = vmul.f32 1.0, %v2193
    %vm2195 = vcmask 7168
    %2196 = vst.msk [vmem:[%s7] sm:$0xff] %vm2195, %v2194
    // Predicated region
    $region42: #{tpu_custom_call.1} parent=1 // pred_check
      _
    $region43: #{tpu_custom_call.1} parent=1 // pred_check_branch
      %2198 = sbr.rel (0) target = $region45
    $region44: #{tpu_custom_call.1} parent=1 // pred_region
      _
    $region45: #{tpu_custom_call.1} parent=1 // pred_fallthru
      _
    // Predicated region
    $region46: #{tpu_custom_call.1} parent=1 // pred_check
      _
    $region47: #{tpu_custom_call.1} parent=1 // pred_check_branch
      %2200 = sbr.rel (0) target = $region49
    $region48: #{tpu_custom_call.1} parent=1 // pred_region
      _
    $region49: #{tpu_custom_call.1} parent=1 // pred_fallthru
      _
    %2201 = vsyncpa [#allocation5], 1
    %2202 = vsyncpa [#allocation7], 1

</llo_original>
